<compile_context>
chip_gen: v6e
topology: v6e:2x2x1
jax: 0.10.0
libtpu: 0.0.40
codegen_flags: <defaults>
</compile_context>

<pallas_src>
import jax
import jax.numpy as jnp
from jax.experimental import pallas as pl
from jax.experimental.pallas import tpu as pltpu

H1, H2 = 512, 256
LEAK = 0.2


def _round_up(x, m):
    return ((x + m - 1) // m) * m


def _discriminator_kernel(x_ref, w1_ref, b1_ref, w2_ref, b2_ref, w3_ref, b3_ref, o_ref):
    """One batch tile of the 3-layer MLP. x arrives f32; matmuls run bf16 on the MXU."""
    x = x_ref[...].astype(jnp.bfloat16)                               # (TB, F) cast on VPU

    # layer1 (bf16 MXU, f32 accumulate) + LeakyReLU(0.2)
    h1 = jnp.dot(x, w1_ref[...], preferred_element_type=jnp.float32) + b1_ref[...]
    h1 = jnp.where(h1 >= 0.0, h1, LEAK * h1)                          # f32 on VPU

    # layer2 + LeakyReLU(0.2)
    h2 = jnp.dot(h1.astype(jnp.bfloat16), w2_ref[...],
                 preferred_element_type=jnp.float32) + b2_ref[...]
    h2 = jnp.where(h2 >= 0.0, h2, LEAK * h2)                          # (TB, 256) f32

    # layer3: N=1 output -> VPU multiply + XLU lane-reduce (skip a wasteful (256,1) MXU matmul)
    y = jnp.sum(h2 * w3_ref[...], axis=-1) + b3_ref[0, 0]             # (TB,)

    # Lane-dense store: output block is (1, TB), written as a full-width row.
    o_ref[...] = y[None, :].astype(o_ref.dtype)


def discriminator_forward(x_nchw, params, *, max_batch_tile=1024):
    """x_nchw: (B, C, H, W) float32. Returns (B, 1) float32 logits."""
    w1, b1, w2, b2, w3, b3 = params
    b_size = x_nchw.shape[0]
    feat = x_nchw.shape[1] * x_nchw.shape[2] * x_nchw.shape[3]
    assert w1.shape == (feat, H1)

    # glue: flatten exactly like torch's x.view(b, c*h*w) -- free metadata reshape
    x = x_nchw.reshape(b_size, feat)

    # Batch tiling: one full-batch tile when it fits, otherwise a 128-aligned tile
    # (128 keeps the lane-dense output block and x-tile sublane alignment legal; we round
    #  DOWN so the tile never exceeds the caller's cap).
    if b_size <= max_batch_tile:
        tb = b_size
    else:
        tb = max(128, (max_batch_tile // 128) * 128)
    b_pad = _round_up(b_size, tb)
    if b_pad != b_size:
        x = jnp.pad(x, ((0, b_pad - b_size), (0, 0)))   # only in the ragged multi-tile case
    grid = b_pad // tb

    # MXU operands in bf16; biases / VPU math stay f32 (v5e-friendly).
    w1_b = w1.astype(jnp.bfloat16)
    w2_b = w2.astype(jnp.bfloat16)
    w3_row = w3.reshape(1, H2).astype(jnp.float32)        # (256,1) -> (1,256) row for VPU
    b1_f = b1.reshape(1, H1).astype(jnp.float32)
    b2_f = b2.reshape(1, H2).astype(jnp.float32)
    b3_s = b3.reshape(1, 1).astype(jnp.float32)           # SMEM scalar

    resident = lambda shape: pl.BlockSpec(shape, lambda i: (0, 0))

    cost = pl.CostEstimate(
        flops=2 * b_pad * (feat * H1 + H1 * H2 + H2),
        transcendentals=0,
        bytes_accessed=(b_pad * feat * 4            # x read (f32)
                        + feat * H1 * 2 + H1 * H2 * 2   # bf16 weights
                        + (H1 + H2 + H2 + 1) * 4        # biases + w3 row
                        + b_pad * 4),                   # output
    )

    out = pl.pallas_call(
        _discriminator_kernel,
        out_shape=jax.ShapeDtypeStruct((1, b_pad), jnp.float32),
        grid_spec=pl.GridSpec(
            grid=(grid,),
            in_specs=[
                pl.BlockSpec((tb, feat), lambda i: (i, 0)),   # x tile (f32), pipelined
                resident((feat, H1)),                         # W1 (bf16), VMEM-resident
                resident((1, H1)),                            # b1 (f32)
                resident((H1, H2)),                           # W2 (bf16)
                resident((1, H2)),                            # b2 (f32)
                resident((1, H2)),                            # w3 row (f32)
                pl.BlockSpec(memory_space=pltpu.MemorySpace.SMEM),  # b3 scalar
            ],
            out_specs=pl.BlockSpec((1, tb), lambda i: (0, i)),      # lane-dense writeback
        ),
        # NOTE: on v7x, if profiling shows only one TensorCore busy, switch the batch axis to
        # pltpu.CORE_PARALLEL (plain "parallel" has near-zero codegen effect on 1-TC chips).
        compiler_params=pltpu.CompilerParams(
            dimension_semantics=("parallel",),
            vmem_limit_bytes=32 * 1024 * 1024,
        ),
        cost_estimate=cost,
    )(x, w1_b, b1_f, w2_b, b2_f, w3_row, b3_s)

    return out.reshape(-1)[:b_size].reshape(b_size, 1)


def init_params(key, input_size=784):
    """Deterministic synthetic parameters (shapes match the nn.Linear layers)."""
    k1, k2, k3, k4, k5, k6 = jax.random.split(key, 6)
    w1 = jax.random.normal(k1, (input_size, H1), jnp.float32) * 0.02
    b1 = jax.random.normal(k2, (1, H1), jnp.float32) * 0.02
    w2 = jax.random.normal(k3, (H1, H2), jnp.float32) * 0.02
    b2 = jax.random.normal(k4, (1, H2), jnp.float32) * 0.02
    w3 = jax.random.normal(k5, (H2, 1), jnp.float32) * 0.02
    b3 = jax.random.normal(k6, (1, 1), jnp.float32) * 0.02
    return (w1, b1, w2, b2, w3, b3)


def reference_forward(x_nchw, params):
    """Pure-JAX reference using the same bf16-matmul / f32-accumulate recipe."""
    w1, b1, w2, b2, w3, b3 = params
    b_size = x_nchw.shape[0]
    x = x_nchw.reshape(b_size, -1)
    h1 = jnp.dot(x.astype(jnp.bfloat16), w1.astype(jnp.bfloat16),
                 preferred_element_type=jnp.float32) + b1
    h1 = jnp.where(h1 >= 0.0, h1, LEAK * h1)
    h2 = jnp.dot(h1.astype(jnp.bfloat16), w2.astype(jnp.bfloat16),
                 preferred_element_type=jnp.float32) + b2
    h2 = jnp.where(h2 >= 0.0, h2, LEAK * h2)
    return jnp.sum(h2 * w3.reshape(1, H2), axis=-1, keepdims=True) + b3


if __name__ == "__main__":
    key = jax.random.PRNGKey(0)
    kx, kp = jax.random.split(key)

    # Small input consistent with the module default: (B=2, C=1, H=28, W=28) -> 784 features.
    x = jax.random.normal(kx, (2, 1, 28, 28), jnp.float32)
    params = init_params(kp, input_size=1 * 28 * 28)

    y = jax.block_until_ready(discriminator_forward(x, params))
    y_ref = reference_forward(x, params)
    assert y.shape == (2, 1), y.shape
    assert jnp.allclose(y, y_ref, atol=5e-3, rtol=5e-3), (y, y_ref)

    # Exercise the multi-step pipelined grid + ragged-batch padding/slicing path.
    x2 = jax.random.normal(jax.random.PRNGKey(1), (300, 1, 28, 28), jnp.float32)
    y2 = jax.block_until_ready(discriminator_forward(x2, params, max_batch_tile=128))
    y2_ref = reference_forward(x2, params)
    assert y2.shape == (300, 1), y2.shape
    assert jnp.allclose(y2, y2_ref, atol=5e-3, rtol=5e-3), (y2, y2_ref)

    print("KERNEL_OK")
</pallas_src>

<mosaic_0001>
module attributes {stable_mosaic.version = 11 : i64} {
  func.func @_discriminator_kernel(%arg0: i32, %arg1: memref<2x784xf32, #tpu.memory_space<vmem>>, %arg2: memref<784x512xbf16, #tpu.memory_space<vmem>>, %arg3: memref<1x512xf32, #tpu.memory_space<vmem>>, %arg4: memref<512x256xbf16, #tpu.memory_space<vmem>>, %arg5: memref<1x256xf32, #tpu.memory_space<vmem>>, %arg6: memref<1x256xf32, #tpu.memory_space<vmem>>, %arg7: memref<1x1xf32, #tpu.memory_space<smem>>, %arg8: memref<1x2xf32, #tpu.memory_space<vmem>>) attributes {dimension_semantics = [#tpu.dimension_semantics<parallel>], iteration_bounds = array<i64: 1>, scalar_prefetch = 0 : i64, scratch_operands = 0 : i64, tpu.core_type = #tpu.core_type<tc>, window_params = [{transform_indices = @transform_0, window_bounds = array<i64: 2, 784>}, {pipeline_mode = #tpu.pipeline_mode<synchronous>, transform_indices = @transform_1, window_bounds = array<i64: 784, 512>}, {pipeline_mode = #tpu.pipeline_mode<synchronous>, transform_indices = @transform_2, window_bounds = array<i64: 1, 512>}, {pipeline_mode = #tpu.pipeline_mode<synchronous>, transform_indices = @transform_3, window_bounds = array<i64: 512, 256>}, {pipeline_mode = #tpu.pipeline_mode<synchronous>, transform_indices = @transform_4, window_bounds = array<i64: 1, 256>}, {pipeline_mode = #tpu.pipeline_mode<synchronous>, transform_indices = @transform_5, window_bounds = array<i64: 1, 256>}, {transform_indices = @transform_6, window_bounds = array<i64: 1, 1>}, {transform_indices = @transform_7, window_bounds = array<i64: 1, 2>}]} {
    %c0 = arith.constant 0 : index
    %c0_0 = arith.constant 0 : index
    %0 = vector.load %arg1[%c0, %c0_0] : memref<2x784xf32, #tpu.memory_space<vmem>>, vector<2x784xf32>
    %1 = arith.truncf %0 : vector<2x784xf32> to vector<2x784xbf16>
    %c0_1 = arith.constant 0 : index
    %c0_2 = arith.constant 0 : index
    %2 = vector.load %arg2[%c0_1, %c0_2] : memref<784x512xbf16, #tpu.memory_space<vmem>>, vector<784x512xbf16>
    %cst = arith.constant dense<0.000000e+00> : vector<2x512xf32>
    %3 = tpu.matmul %1, %2, %cst {dimension_numbers = #tpu.dot_dimension_numbers<[1], [0], [0], [1], [0, 0, 1, 1], [], []>} : vector<2x784xbf16>, vector<784x512xbf16>, vector<2x512xf32> -> vector<2x512xf32>
    %c0_3 = arith.constant 0 : index
    %c0_4 = arith.constant 0 : index
    %4 = vector.load %arg3[%c0_3, %c0_4] : memref<1x512xf32, #tpu.memory_space<vmem>>, vector<1x512xf32>
    %5 = vector.broadcast %4 : vector<1x512xf32> to vector<2x512xf32>
    %6 = arith.addf %3, %5 : vector<2x512xf32>
    %cst_5 = arith.constant 0.000000e+00 : f32
    %7 = vector.broadcast %cst_5 : f32 to vector<2x512xf32>
    %8 = arith.cmpf oge, %6, %7 : vector<2x512xf32>
    %cst_6 = arith.constant 2.000000e-01 : f32
    %9 = vector.broadcast %cst_6 : f32 to vector<2x512xf32>
    %10 = arith.mulf %9, %6 : vector<2x512xf32>
    %11 = arith.select %8, %6, %10 : vector<2x512xi1>, vector<2x512xf32>
    %12 = arith.truncf %11 : vector<2x512xf32> to vector<2x512xbf16>
    %c0_7 = arith.constant 0 : index
    %c0_8 = arith.constant 0 : index
    %13 = vector.load %arg4[%c0_7, %c0_8] : memref<512x256xbf16, #tpu.memory_space<vmem>>, vector<512x256xbf16>
    %cst_9 = arith.constant dense<0.000000e+00> : vector<2x256xf32>
    %14 = tpu.matmul %12, %13, %cst_9 {dimension_numbers = #tpu.dot_dimension_numbers<[1], [0], [0], [1], [0, 0, 1, 1], [], []>} : vector<2x512xbf16>, vector<512x256xbf16>, vector<2x256xf32> -> vector<2x256xf32>
    %c0_10 = arith.constant 0 : index
    %c0_11 = arith.constant 0 : index
    %15 = vector.load %arg5[%c0_10, %c0_11] : memref<1x256xf32, #tpu.memory_space<vmem>>, vector<1x256xf32>
    %16 = vector.broadcast %15 : vector<1x256xf32> to vector<2x256xf32>
    %17 = arith.addf %14, %16 : vector<2x256xf32>
    %cst_12 = arith.constant 0.000000e+00 : f32
    %18 = vector.broadcast %cst_12 : f32 to vector<2x256xf32>
    %19 = arith.cmpf oge, %17, %18 : vector<2x256xf32>
    %cst_13 = arith.constant 2.000000e-01 : f32
    %20 = vector.broadcast %cst_13 : f32 to vector<2x256xf32>
    %21 = arith.mulf %20, %17 : vector<2x256xf32>
    %22 = arith.select %19, %17, %21 : vector<2x256xi1>, vector<2x256xf32>
    %c0_14 = arith.constant 0 : index
    %c0_15 = arith.constant 0 : index
    %23 = vector.load %arg6[%c0_14, %c0_15] : memref<1x256xf32, #tpu.memory_space<vmem>>, vector<1x256xf32>
    %24 = vector.broadcast %23 : vector<1x256xf32> to vector<2x256xf32>
    %25 = arith.mulf %22, %24 : vector<2x256xf32>
    %cst_16 = arith.constant dense<0.000000e+00> : vector<2xf32>
    %26 = vector.multi_reduction <add>, %25, %cst_16 [1] : vector<2x256xf32> to vector<2xf32>
    %c0_17 = arith.constant 0 : index
    %c0_18 = arith.constant 0 : index
    %27 = memref.load %arg7[%c0_17, %c0_18] : memref<1x1xf32, #tpu.memory_space<smem>>
    %28 = vector.broadcast %27 : f32 to vector<2xf32>
    %29 = arith.addf %26, %28 : vector<2xf32>
    %30 = vector.shape_cast %29 : vector<2xf32> to vector<1x2xf32>
    %c0_19 = arith.constant 0 : index
    %c0_20 = arith.constant 0 : index
    %31 = vector.load %arg8[%c0_19, %c0_20] : memref<1x2xf32, #tpu.memory_space<vmem>>, vector<1x2xf32>
    tpu.vector_store %arg8[%c0_19, %c0_20], %30 {strides = array<i32>} : memref<1x2xf32, #tpu.memory_space<vmem>>, vector<1x2xf32>,
    return
  }
  func.func @transform_0(%arg0: i32) -> (i32, i32) {
    %c0_i32 = arith.constant 0 : i32
    %c0_i32_0 = arith.constant 0 : i32
    return %arg0, %c0_i32 : i32, i32
  }
  func.func @transform_1(%arg0: i32) -> (i32, i32) {
    %c0_i32 = arith.constant 0 : i32
    %c0_i32_0 = arith.constant 0 : i32
    %c0_i32_1 = arith.constant 0 : i32
    return %c0_i32, %c0_i32_0 : i32, i32
  }
  func.func @transform_2(%arg0: i32) -> (i32, i32) {
    %c0_i32 = arith.constant 0 : i32
    %c0_i32_0 = arith.constant 0 : i32
    %c0_i32_1 = arith.constant 0 : i32
    return %c0_i32, %c0_i32_0 : i32, i32
  }
  func.func @transform_3(%arg0: i32) -> (i32, i32) {
    %c0_i32 = arith.constant 0 : i32
    %c0_i32_0 = arith.constant 0 : i32
    %c0_i32_1 = arith.constant 0 : i32
    return %c0_i32, %c0_i32_0 : i32, i32
  }
  func.func @transform_4(%arg0: i32) -> (i32, i32) {
    %c0_i32 = arith.constant 0 : i32
    %c0_i32_0 = arith.constant 0 : i32
    %c0_i32_1 = arith.constant 0 : i32
    return %c0_i32, %c0_i32_0 : i32, i32
  }
  func.func @transform_5(%arg0: i32) -> (i32, i32) {
    %c0_i32 = arith.constant 0 : i32
    %c0_i32_0 = arith.constant 0 : i32
    %c0_i32_1 = arith.constant 0 : i32
    return %c0_i32, %c0_i32_0 : i32, i32
  }
  func.func @transform_6(%arg0: i32) -> (i32, i32) {
    %c0_i32 = arith.constant 0 : i32
    %c0_i32_0 = arith.constant 0 : i32
    %c0_i32_1 = arith.constant 0 : i32
    return %c0_i32, %c0_i32_0 : i32, i32
  }
  func.func @transform_7(%arg0: i32) -> (i32, i32) {
    %c0_i32 = arith.constant 0 : i32
    %c0_i32_0 = arith.constant 0 : i32
    return %c0_i32, %arg0 : i32, i32
  }
}

</mosaic_0001>

<llo_original>
// kernel: tpu_custom_call.1
$region0: #{tpu_custom_call.1}
  #allocation0 [shape = 'u32[]', space=smem, size = 0x4, offset = 0x4, fixed_abs, tag = 'smem constant byte address 0x4 - core index']
  #allocation1 [shape = 'u32[144,128]{1,0:T(1,128)}', space=vmem, size = 0x12000, scoped, tag = 'internal scratch']
  #allocation2 [shape = 'f32[1,1]{1,0:T(1,128)S(6)}', space=smem, size = 0x200, scoped, tag = 'scoped memory for tpu_custom_call.1']
  %s0 = inlined_call_operand.hbm [shape: f32[2,784], index: 0, kind: input, shape index: {}]
  %s1 = inlined_call_operand.hbm [shape: bf16[784,512], index: 1, kind: input, shape index: {}]
  %s2 = inlined_call_operand.vmem [shape: f32[1,512], index: 2, kind: input, shape index: {}]
  %s3 = inlined_call_operand.hbm [shape: bf16[512,256], index: 3, kind: input, shape index: {}]
  %s4 = inlined_call_operand.vmem [shape: f32[1,256], index: 4, kind: input, shape index: {}]
  %s5 = inlined_call_operand.vmem [shape: f32[1,256], index: 5, kind: input, shape index: {}]
  %s6 = inlined_call_operand.<no memory space> [shape: f32[1,1], index: 6, kind: input, shape index: {}]
  %s7 = inlined_call_operand.hbm [shape: f32[1,2], index: 7, kind: output, shape index: {}]
  %s8 = sld [smem:[#allocation0]]
  $region50: #{tpu_custom_call.1} parent=0
    _
  %s10 = ssub.s32 1, %s8
  %s11 = scalar_select 0, %s10, %s8
  %12 = sst [smem:[#allocation2]] %s6
  $region1: #{tpu_custom_call.1} parent=0
    #allocation3 [shape = 'u8[7168]{0}', space=vmem, size = 0x1c00, scoped, tag = 'input window, operand 0, single buffered']
    #allocation4 [shape = 's32[1]{0}', space=sflag, size = 0x4, scoped, tag = 'scoped memory for tpu_custom_call.1']
    #allocation5 [shape = 's32[1]{0}', space=sflag, size = 0x4, scoped, tag = 'scoped memory for tpu_custom_call.1']
    #allocation6 [shape = 'u8[802816]{0}', space=vmem, size = 0xc4000, scoped, tag = 'input window, operand 1, single buffered']
    #allocation7 [shape = 's32[1]{0}', space=sflag, size = 0x4, scoped, tag = 'scoped memory for tpu_custom_call.1']
    #allocation8 [shape = 'u8[262144]{0}', space=vmem, size = 0x40000, scoped, tag = 'input window, operand 3, single buffered']
    #allocation9 [shape = 'u8[512]{0}', space=vmem, size = 0x400, scoped, tag = 'output window, operand 0, single buffered']
    %13 = vsyncpa [#allocation4], 0
    %14 = vsyncpa [#allocation7], 0
    %15 = vsyncpa [#allocation5], 0
    // Predicated region
    $region2: #{tpu_custom_call.1} parent=1 // pred_check
      _
    $region3: #{tpu_custom_call.1} parent=1 // pred_check_branch
      %17 = sbr.rel (0) target = $region5
    $region4: #{tpu_custom_call.1} parent=1 // pred_region
      %s19 = ssub.s32 224, 224
      %20 = vsyncadd [#allocation4], %s19
      %s22 = sshll.u32 [#allocation3], 4
      %s23 = int_to_ptr.vmem [resolvable:$true] %s22
      %25 = dma.hbm_to_vmem [thread:$0]  %s0, 224, %s23, [#allocation4]
    $region5: #{tpu_custom_call.1} parent=1 // pred_fallthru
      _
    // Predicated region
    $region6: #{tpu_custom_call.1} parent=1 // pred_check
      _
    $region7: #{tpu_custom_call.1} parent=1 // pred_check_branch
      %27 = sbr.rel (0) target = $region9
    $region8: #{tpu_custom_call.1} parent=1 // pred_region
      %s29 = ssub.s32 25088, 25088
      %30 = vsyncadd [#allocation7], %s29
      %s31 = sshll.u32 [#allocation6], 4
      %s32 = int_to_ptr.vmem [resolvable:$true] %s31
      %37 = dma.hbm_to_vmem [thread:$0]  %s1, 25088, %s32, [#allocation7], 256, 256, 16
    $region9: #{tpu_custom_call.1} parent=1 // pred_fallthru
      _
    // Predicated region
    $region10: #{tpu_custom_call.1} parent=1 // pred_check
      _
    $region11: #{tpu_custom_call.1} parent=1 // pred_check_branch
      %39 = sbr.rel (0) target = $region13
    $region12: #{tpu_custom_call.1} parent=1 // pred_region
      _
    $region13: #{tpu_custom_call.1} parent=1 // pred_fallthru
      _
    // Predicated region
    $region14: #{tpu_custom_call.1} parent=1 // pred_check
      _
    $region15: #{tpu_custom_call.1} parent=1 // pred_check_branch
      %41 = sbr.rel (0) target = $region17
    $region16: #{tpu_custom_call.1} parent=1 // pred_region
      %s43 = ssub.s32 8192, 8192
      %44 = vsyncadd [#allocation7], %s43
      %s45 = sshll.u32 [#allocation8], 4
      %s46 = int_to_ptr.vmem [resolvable:$true] %s45
      %51 = dma.hbm_to_vmem [thread:$0]  %s3, 8192, %s46, [#allocation7], 128, 128, 8
    $region17: #{tpu_custom_call.1} parent=1 // pred_fallthru
      _
    // Predicated region
    $region18: #{tpu_custom_call.1} parent=1 // pred_check
      _
    $region19: #{tpu_custom_call.1} parent=1 // pred_check_branch
      %53 = sbr.rel (0) target = $region21
    $region20: #{tpu_custom_call.1} parent=1 // pred_region
      _
    $region21: #{tpu_custom_call.1} parent=1 // pred_fallthru
      _
    // Predicated region
    $region22: #{tpu_custom_call.1} parent=1 // pred_check
      _
    $region23: #{tpu_custom_call.1} parent=1 // pred_check_branch
      %55 = sbr.rel (0) target = $region25
    $region24: #{tpu_custom_call.1} parent=1 // pred_region
      _
    $region25: #{tpu_custom_call.1} parent=1 // pred_fallthru
      _
    // Predicated region
    $region26: #{tpu_custom_call.1} parent=1 // pred_check
      _
    $region27: #{tpu_custom_call.1} parent=1 // pred_check_branch
      %57 = sbr.rel (0) target = $region29
    $region28: #{tpu_custom_call.1} parent=1 // pred_region
      _
    $region29: #{tpu_custom_call.1} parent=1 // pred_fallthru
      _
    // Predicated region
    $region30: #{tpu_custom_call.1} parent=1 // pred_check
      _
    $region31: #{tpu_custom_call.1} parent=1 // pred_check_branch
      %59 = sbr.rel (0) target = $region33
    $region32: #{tpu_custom_call.1} parent=1 // pred_region
      %60 = dma.done [#allocation4], 224
    $region33: #{tpu_custom_call.1} parent=1 // pred_fallthru
      _
    // Predicated region
    $region34: #{tpu_custom_call.1} parent=1 // pred_check
      _
    $region35: #{tpu_custom_call.1} parent=1 // pred_check_branch
      %62 = sbr.rel (0) target = $region37
    $region36: #{tpu_custom_call.1} parent=1 // pred_region
      %63 = dma.done [#allocation7], 25088
    $region37: #{tpu_custom_call.1} parent=1 // pred_fallthru
      _
    // Predicated region
    $region38: #{tpu_custom_call.1} parent=1 // pred_check
      _
    $region39: #{tpu_custom_call.1} parent=1 // pred_check_branch
      %65 = sbr.rel (0) target = $region41
    $region40: #{tpu_custom_call.1} parent=1 // pred_region
      %66 = dma.done [#allocation7], 8192
    $region41: #{tpu_custom_call.1} parent=1 // pred_fallthru
      _
    %v68 = vld [vmem:[#allocation3] sm:$0xff]
    %v69 = vld [vmem:[#allocation3 + $0x8] sm:$0x3f]
    %v72 = vcombine.high %v68, %v68
    %v74 = vunpack.c.l.s4 1983009808
    %v75 = vunpack.c.0.s8 %v74
    %v76 = vlaneseq
    %v77 = vshrl.u32 %v76, 7
    %v78 = vsub.s32 %v75, %v77
    %v79 = vrot.slane %v68, %v78
    %v81 = vunpack.c.l.s4 1983009808
    %v82 = vunpack.c.0.s8 %v81
    %v83 = vlaneseq
    %v84 = vshrl.u32 %v83, 7
    %v85 = vsub.s32 %v82, %v84
    %v86 = vrot.slane %v72, %v85
    %v87 = vcombine.high %v79, %v79
    %v88 = vcombine.high %v86, %v86
    %v89 = vcombine.high %v69, %v69
    %v91 = vunpack.c.l.s4 1983009808
    %v92 = vunpack.c.0.s8 %v91
    %v93 = vlaneseq
    %v94 = vshrl.u32 %v93, 7
    %v95 = vsub.s32 %v92, %v94
    %v96 = vrot.slane %v69, %v95
    %v98 = vunpack.c.l.s4 1983009808
    %v99 = vunpack.c.0.s8 %v98
    %v100 = vlaneseq
    %v101 = vshrl.u32 %v100, 7
    %v102 = vsub.s32 %v99, %v101
    %v103 = vrot.slane %v89, %v102
    %v104 = vcombine.high %v96, %v96
    %v112 = vpack.c.bf16 %v79, %v79
    %v113 = vpack.c.bf16 %v87, %v87
    %v114 = vpack.c.bf16 %v86, %v86
    %v115 = vpack.c.bf16 %v88, %v88
    %v116 = vpack.c.bf16 %v96, %v96
    %v117 = vpack.c.bf16 %v104, %v104
    %v118 = vpack.c.bf16 %v103, %v103
    %v119 = vld [vmem:[#allocation6] sm:$0xff]
    %v120 = vld [vmem:[#allocation6 + $0x8] sm:$0xff]
    %v121 = vld [vmem:[#allocation6 + $0x10] sm:$0xff]
    %v122 = vld [vmem:[#allocation6 + $0x18] sm:$0xff]
    %v123 = vld [vmem:[#allocation6 + $0x20] sm:$0xff]
    %v124 = vld [vmem:[#allocation6 + $0x28] sm:$0xff]
    %v125 = vld [vmem:[#allocation6 + $0x30] sm:$0xff]
    %v126 = vld [vmem:[#allocation6 + $0x38] sm:$0xff]
    %v127 = vld [vmem:[#allocation6 + $0x40] sm:$0xff]
    %v128 = vld [vmem:[#allocation6 + $0x48] sm:$0xff]
    %v129 = vld [vmem:[#allocation6 + $0x50] sm:$0xff]
    %v130 = vld [vmem:[#allocation6 + $0x58] sm:$0xff]
    %v131 = vld [vmem:[#allocation6 + $0x60] sm:$0xff]
    %v132 = vld [vmem:[#allocation6 + $0x68] sm:$0xff]
    %v133 = vld [vmem:[#allocation6 + $0x70] sm:$0xff]
    %v134 = vld [vmem:[#allocation6 + $0x78] sm:$0xff]
    %v135 = vld [vmem:[#allocation6 + $0x80] sm:$0xff]
    %v136 = vld [vmem:[#allocation6 + $0x88] sm:$0xff]
    %v137 = vld [vmem:[#allocation6 + $0x90] sm:$0xff]
    %v138 = vld [vmem:[#allocation6 + $0x98] sm:$0xff]
    %v139 = vld [vmem:[#allocation6 + $0xa0] sm:$0xff]
    %v140 = vld [vmem:[#allocation6 + $0xa8] sm:$0xff]
    %v141 = vld [vmem:[#allocation6 + $0xb0] sm:$0xff]
    %v142 = vld [vmem:[#allocation6 + $0xb8] sm:$0xff]
    %v143 = vld [vmem:[#allocation6 + $0xc0] sm:$0xff]
    %v144 = vld [vmem:[#allocation6 + $0xc8] sm:$0xff]
    %v145 = vld [vmem:[#allocation6 + $0xd0] sm:$0xff]
    %v146 = vld [vmem:[#allocation6 + $0xd8] sm:$0xff]
    %v147 = vld [vmem:[#allocation6 + $0xe0] sm:$0xff]
    %v148 = vld [vmem:[#allocation6 + $0xe8] sm:$0xff]
    %v149 = vld [vmem:[#allocation6 + $0xf0] sm:$0xff]
    %v150 = vld [vmem:[#allocation6 + $0xf8] sm:$0xff]
    %v151 = vld [vmem:[#allocation6 + $0x100] sm:$0xff]
    %v152 = vld [vmem:[#allocation6 + $0x108] sm:$0xff]
    %v153 = vld [vmem:[#allocation6 + $0x110] sm:$0xff]
    %v154 = vld [vmem:[#allocation6 + $0x118] sm:$0xff]
    %v155 = vld [vmem:[#allocation6 + $0x120] sm:$0xff]
    %v156 = vld [vmem:[#allocation6 + $0x128] sm:$0xff]
    %v157 = vld [vmem:[#allocation6 + $0x130] sm:$0xff]
    %v158 = vld [vmem:[#allocation6 + $0x138] sm:$0xff]
    %v159 = vld [vmem:[#allocation6 + $0x140] sm:$0xff]
    %v160 = vld [vmem:[#allocation6 + $0x148] sm:$0xff]
    %v161 = vld [vmem:[#allocation6 + $0x150] sm:$0xff]
    %v162 = vld [vmem:[#allocation6 + $0x158] sm:$0xff]
    %v163 = vld [vmem:[#allocation6 + $0x160] sm:$0xff]
    %v164 = vld [vmem:[#allocation6 + $0x168] sm:$0xff]
    %v165 = vld [vmem:[#allocation6 + $0x170] sm:$0xff]
    %v166 = vld [vmem:[#allocation6 + $0x178] sm:$0xff]
    %v167 = vld [vmem:[#allocation6 + $0x180] sm:$0xff]
    %v168 = vld [vmem:[#allocation6 + $0x188] sm:$0xff]
    %v169 = vld [vmem:[#allocation6 + $0x190] sm:$0xff]
    %v170 = vld [vmem:[#allocation6 + $0x198] sm:$0xff]
    %v171 = vld [vmem:[#allocation6 + $0x1a0] sm:$0xff]
    %v172 = vld [vmem:[#allocation6 + $0x1a8] sm:$0xff]
    %v173 = vld [vmem:[#allocation6 + $0x1b0] sm:$0xff]
    %v174 = vld [vmem:[#allocation6 + $0x1b8] sm:$0xff]
    %v175 = vld [vmem:[#allocation6 + $0x1c0] sm:$0xff]
    %v176 = vld [vmem:[#allocation6 + $0x1c8] sm:$0xff]
    %v177 = vld [vmem:[#allocation6 + $0x1d0] sm:$0xff]
    %v178 = vld [vmem:[#allocation6 + $0x1d8] sm:$0xff]
    %v179 = vld [vmem:[#allocation6 + $0x1e0] sm:$0xff]
    %v180 = vld [vmem:[#allocation6 + $0x1e8] sm:$0xff]
    %v181 = vld [vmem:[#allocation6 + $0x1f0] sm:$0xff]
    %v182 = vld [vmem:[#allocation6 + $0x1f8] sm:$0xff]
    %v183 = vld [vmem:[#allocation6 + $0x200] sm:$0xff]
    %v184 = vld [vmem:[#allocation6 + $0x208] sm:$0xff]
    %v185 = vld [vmem:[#allocation6 + $0x210] sm:$0xff]
    %v186 = vld [vmem:[#allocation6 + $0x218] sm:$0xff]
    %v187 = vld [vmem:[#allocation6 + $0x220] sm:$0xff]
    %v188 = vld [vmem:[#allocation6 + $0x228] sm:$0xff]
    %v189 = vld [vmem:[#allocation6 + $0x230] sm:$0xff]
    %v190 = vld [vmem:[#allocation6 + $0x238] sm:$0xff]
    %v191 = vld [vmem:[#allocation6 + $0x240] sm:$0xff]
    %v192 = vld [vmem:[#allocation6 + $0x248] sm:$0xff]
    %v193 = vld [vmem:[#allocation6 + $0x250] sm:$0xff]
    %v194 = vld [vmem:[#allocation6 + $0x258] sm:$0xff]
    %v195 = vld [vmem:[#allocation6 + $0x260] sm:$0xff]
    %v196 = vld [vmem:[#allocation6 + $0x268] sm:$0xff]
    %v197 = vld [vmem:[#allocation6 + $0x270] sm:$0xff]
    %v198 = vld [vmem:[#allocation6 + $0x278] sm:$0xff]
    %v199 = vld [vmem:[#allocation6 + $0x280] sm:$0xff]
    %v200 = vld [vmem:[#allocation6 + $0x288] sm:$0xff]
    %v201 = vld [vmem:[#allocation6 + $0x290] sm:$0xff]
    %v202 = vld [vmem:[#allocation6 + $0x298] sm:$0xff]
    %v203 = vld [vmem:[#allocation6 + $0x2a0] sm:$0xff]
    %v204 = vld [vmem:[#allocation6 + $0x2a8] sm:$0xff]
    %v205 = vld [vmem:[#allocation6 + $0x2b0] sm:$0xff]
    %v206 = vld [vmem:[#allocation6 + $0x2b8] sm:$0xff]
    %v207 = vld [vmem:[#allocation6 + $0x2c0] sm:$0xff]
    %v208 = vld [vmem:[#allocation6 + $0x2c8] sm:$0xff]
    %v209 = vld [vmem:[#allocation6 + $0x2d0] sm:$0xff]
    %v210 = vld [vmem:[#allocation6 + $0x2d8] sm:$0xff]
    %v211 = vld [vmem:[#allocation6 + $0x2e0] sm:$0xff]
    %v212 = vld [vmem:[#allocation6 + $0x2e8] sm:$0xff]
    %v213 = vld [vmem:[#allocation6 + $0x2f0] sm:$0xff]
    %v214 = vld [vmem:[#allocation6 + $0x2f8] sm:$0xff]
    %v215 = vld [vmem:[#allocation6 + $0x300] sm:$0xff]
    %v216 = vld [vmem:[#allocation6 + $0x308] sm:$0xff]
    %v217 = vld [vmem:[#allocation6 + $0x310] sm:$0xff]
    %v218 = vld [vmem:[#allocation6 + $0x318] sm:$0xff]
    %v219 = vld [vmem:[#allocation6 + $0x320] sm:$0xff]
    %v220 = vld [vmem:[#allocation6 + $0x328] sm:$0xff]
    %v221 = vld [vmem:[#allocation6 + $0x330] sm:$0xff]
    %v222 = vld [vmem:[#allocation6 + $0x338] sm:$0xff]
    %v223 = vld [vmem:[#allocation6 + $0x340] sm:$0xff]
    %v224 = vld [vmem:[#allocation6 + $0x348] sm:$0xff]
    %v225 = vld [vmem:[#allocation6 + $0x350] sm:$0xff]
    %v226 = vld [vmem:[#allocation6 + $0x358] sm:$0xff]
    %v227 = vld [vmem:[#allocation6 + $0x360] sm:$0xff]
    %v228 = vld [vmem:[#allocation6 + $0x368] sm:$0xff]
    %v229 = vld [vmem:[#allocation6 + $0x370] sm:$0xff]
    %v230 = vld [vmem:[#allocation6 + $0x378] sm:$0xff]
    %v231 = vld [vmem:[#allocation6 + $0x380] sm:$0xff]
    %v232 = vld [vmem:[#allocation6 + $0x388] sm:$0xff]
    %v233 = vld [vmem:[#allocation6 + $0x390] sm:$0xff]
    %v234 = vld [vmem:[#allocation6 + $0x398] sm:$0xff]
    %v235 = vld [vmem:[#allocation6 + $0x3a0] sm:$0xff]
    %v236 = vld [vmem:[#allocation6 + $0x3a8] sm:$0xff]
    %v237 = vld [vmem:[#allocation6 + $0x3b0] sm:$0xff]
    %v238 = vld [vmem:[#allocation6 + $0x3b8] sm:$0xff]
    %v239 = vld [vmem:[#allocation6 + $0x3c0] sm:$0xff]
    %v240 = vld [vmem:[#allocation6 + $0x3c8] sm:$0xff]
    %v241 = vld [vmem:[#allocation6 + $0x3d0] sm:$0xff]
    %v242 = vld [vmem:[#allocation6 + $0x3d8] sm:$0xff]
    %v243 = vld [vmem:[#allocation6 + $0x3e0] sm:$0xff]
    %v244 = vld [vmem:[#allocation6 + $0x3e8] sm:$0xff]
    %v245 = vld [vmem:[#allocation6 + $0x3f0] sm:$0xff]
    %v246 = vld [vmem:[#allocation6 + $0x3f8] sm:$0xff]
    %v247 = vld [vmem:[#allocation6 + $0x400] sm:$0xff]
    %v248 = vld [vmem:[#allocation6 + $0x408] sm:$0xff]
    %v249 = vld [vmem:[#allocation6 + $0x410] sm:$0xff]
    %v250 = vld [vmem:[#allocation6 + $0x418] sm:$0xff]
    %v251 = vld [vmem:[#allocation6 + $0x420] sm:$0xff]
    %v252 = vld [vmem:[#allocation6 + $0x428] sm:$0xff]
    %v253 = vld [vmem:[#allocation6 + $0x430] sm:$0xff]
    %v254 = vld [vmem:[#allocation6 + $0x438] sm:$0xff]
    %v255 = vld [vmem:[#allocation6 + $0x440] sm:$0xff]
    %v256 = vld [vmem:[#allocation6 + $0x448] sm:$0xff]
    %v257 = vld [vmem:[#allocation6 + $0x450] sm:$0xff]
    %v258 = vld [vmem:[#allocation6 + $0x458] sm:$0xff]
    %v259 = vld [vmem:[#allocation6 + $0x460] sm:$0xff]
    %v260 = vld [vmem:[#allocation6 + $0x468] sm:$0xff]
    %v261 = vld [vmem:[#allocation6 + $0x470] sm:$0xff]
    %v262 = vld [vmem:[#allocation6 + $0x478] sm:$0xff]
    %v263 = vld [vmem:[#allocation6 + $0x480] sm:$0xff]
    %v264 = vld [vmem:[#allocation6 + $0x488] sm:$0xff]
    %v265 = vld [vmem:[#allocation6 + $0x490] sm:$0xff]
    %v266 = vld [vmem:[#allocation6 + $0x498] sm:$0xff]
    %v267 = vld [vmem:[#allocation6 + $0x4a0] sm:$0xff]
    %v268 = vld [vmem:[#allocation6 + $0x4a8] sm:$0xff]
    %v269 = vld [vmem:[#allocation6 + $0x4b0] sm:$0xff]
    %v270 = vld [vmem:[#allocation6 + $0x4b8] sm:$0xff]
    %v271 = vld [vmem:[#allocation6 + $0x4c0] sm:$0xff]
    %v272 = vld [vmem:[#allocation6 + $0x4c8] sm:$0xff]
    %v273 = vld [vmem:[#allocation6 + $0x4d0] sm:$0xff]
    %v274 = vld [vmem:[#allocation6 + $0x4d8] sm:$0xff]
    %v275 = vld [vmem:[#allocation6 + $0x4e0] sm:$0xff]
    %v276 = vld [vmem:[#allocation6 + $0x4e8] sm:$0xff]
    %v277 = vld [vmem:[#allocation6 + $0x4f0] sm:$0xff]
    %v278 = vld [vmem:[#allocation6 + $0x4f8] sm:$0xff]
    %v279 = vld [vmem:[#allocation6 + $0x500] sm:$0xff]
    %v280 = vld [vmem:[#allocation6 + $0x508] sm:$0xff]
    %v281 = vld [vmem:[#allocation6 + $0x510] sm:$0xff]
    %v282 = vld [vmem:[#allocation6 + $0x518] sm:$0xff]
    %v283 = vld [vmem:[#allocation6 + $0x520] sm:$0xff]
    %v284 = vld [vmem:[#allocation6 + $0x528] sm:$0xff]
    %v285 = vld [vmem:[#allocation6 + $0x530] sm:$0xff]
    %v286 = vld [vmem:[#allocation6 + $0x538] sm:$0xff]
    %v287 = vld [vmem:[#allocation6 + $0x540] sm:$0xff]
    %v288 = vld [vmem:[#allocation6 + $0x548] sm:$0xff]
    %v289 = vld [vmem:[#allocation6 + $0x550] sm:$0xff]
    %v290 = vld [vmem:[#allocation6 + $0x558] sm:$0xff]
    %v291 = vld [vmem:[#allocation6 + $0x560] sm:$0xff]
    %v292 = vld [vmem:[#allocation6 + $0x568] sm:$0xff]
    %v293 = vld [vmem:[#allocation6 + $0x570] sm:$0xff]
    %v294 = vld [vmem:[#allocation6 + $0x578] sm:$0xff]
    %v295 = vld [vmem:[#allocation6 + $0x580] sm:$0xff]
    %v296 = vld [vmem:[#allocation6 + $0x588] sm:$0xff]
    %v297 = vld [vmem:[#allocation6 + $0x590] sm:$0xff]
    %v298 = vld [vmem:[#allocation6 + $0x598] sm:$0xff]
    %v299 = vld [vmem:[#allocation6 + $0x5a0] sm:$0xff]
    %v300 = vld [vmem:[#allocation6 + $0x5a8] sm:$0xff]
    %v301 = vld [vmem:[#allocation6 + $0x5b0] sm:$0xff]
    %v302 = vld [vmem:[#allocation6 + $0x5b8] sm:$0xff]
    %v303 = vld [vmem:[#allocation6 + $0x5c0] sm:$0xff]
    %v304 = vld [vmem:[#allocation6 + $0x5c8] sm:$0xff]
    %v305 = vld [vmem:[#allocation6 + $0x5d0] sm:$0xff]
    %v306 = vld [vmem:[#allocation6 + $0x5d8] sm:$0xff]
    %v307 = vld [vmem:[#allocation6 + $0x5e0] sm:$0xff]
    %v308 = vld [vmem:[#allocation6 + $0x5e8] sm:$0xff]
    %v309 = vld [vmem:[#allocation6 + $0x5f0] sm:$0xff]
    %v310 = vld [vmem:[#allocation6 + $0x5f8] sm:$0xff]
    %v311 = vld [vmem:[#allocation6 + $0x600] sm:$0xff]
    %v312 = vld [vmem:[#allocation6 + $0x608] sm:$0xff]
    %v313 = vld [vmem:[#allocation6 + $0x610] sm:$0xff]
    %v314 = vld [vmem:[#allocation6 + $0x618] sm:$0xff]
    %v315 = vld [vmem:[%s2] sm:$0xf]
    %v317 = vlaneseq
    %v318 = vshrl.u32 %v317, 7
    %v319 = vsub.s32 0, %v318
    %v320 = vrot.slane %v315, %v319
    %v321 = vlaneseq
    %v322 = vshrl.u32 %v321, 7
    %v323 = vsub.s32 1, %v322
    %v324 = vrot.slane %v315, %v323
    %v325 = vlaneseq
    %v326 = vshrl.u32 %v325, 7
    %v327 = vsub.s32 2, %v326
    %v328 = vrot.slane %v315, %v327
    %v329 = vlaneseq
    %v330 = vshrl.u32 %v329, 7
    %v331 = vsub.s32 3, %v330
    %v332 = vrot.slane %v315, %v331
    %v533 = vunpack.c.l.b16 %v119
    %v534 = vunpack.c.h.b16 %v119
    %v535 = vunpack.c.l.b16 %v120
    %v536 = vunpack.c.h.b16 %v120
    %v537 = vunpack.c.l.b16 %v121
    %v538 = vunpack.c.h.b16 %v121
    %v539 = vunpack.c.l.b16 %v122
    %v540 = vunpack.c.h.b16 %v122
    %v541 = vunpack.c.l.b16 %v123
    %v542 = vunpack.c.h.b16 %v123
    %v543 = vunpack.c.l.b16 %v124
    %v544 = vunpack.c.h.b16 %v124
    %v545 = vunpack.c.l.b16 %v125
    %v546 = vunpack.c.h.b16 %v125
    %v547 = vunpack.c.l.b16 %v126
    %v548 = vunpack.c.h.b16 %v126
    %v549 = vunpack.c.l.b16 %v127
    %v550 = vunpack.c.h.b16 %v127
    %v551 = vunpack.c.l.b16 %v128
    %v552 = vunpack.c.h.b16 %v128
    %v553 = vunpack.c.l.b16 %v129
    %v554 = vunpack.c.h.b16 %v129
    %v555 = vunpack.c.l.b16 %v130
    %v556 = vunpack.c.h.b16 %v130
    %v557 = vunpack.c.l.b16 %v131
    %v558 = vunpack.c.h.b16 %v131
    %v559 = vunpack.c.l.b16 %v132
    %v560 = vunpack.c.h.b16 %v132
    %v561 = vunpack.c.l.b16 %v133
    %v562 = vunpack.c.h.b16 %v133
    %v563 = vunpack.c.l.b16 %v134
    %v564 = vunpack.c.h.b16 %v134
    %v565 = vunpack.c.l.b16 %v135
    %v566 = vunpack.c.h.b16 %v135
    %v567 = vunpack.c.l.b16 %v136
    %v568 = vunpack.c.h.b16 %v136
    %v569 = vunpack.c.l.b16 %v137
    %v570 = vunpack.c.h.b16 %v137
    %v571 = vunpack.c.l.b16 %v138
    %v572 = vunpack.c.h.b16 %v138
    %v573 = vunpack.c.l.b16 %v139
    %v574 = vunpack.c.h.b16 %v139
    %v575 = vunpack.c.l.b16 %v140
    %v576 = vunpack.c.h.b16 %v140
    %v577 = vunpack.c.l.b16 %v141
    %v578 = vunpack.c.h.b16 %v141
    %v579 = vunpack.c.l.b16 %v142
    %v580 = vunpack.c.h.b16 %v142
    %v581 = vunpack.c.l.b16 %v143
    %v582 = vunpack.c.h.b16 %v143
    %v583 = vunpack.c.l.b16 %v144
    %v584 = vunpack.c.h.b16 %v144
    %v585 = vunpack.c.l.b16 %v145
    %v586 = vunpack.c.h.b16 %v145
    %v587 = vunpack.c.l.b16 %v146
    %v588 = vunpack.c.h.b16 %v146
    %v589 = vunpack.c.l.b16 %v147
    %v590 = vunpack.c.h.b16 %v147
    %v591 = vunpack.c.l.b16 %v148
    %v592 = vunpack.c.h.b16 %v148
    %v593 = vunpack.c.l.b16 %v149
    %v594 = vunpack.c.h.b16 %v149
    %v595 = vunpack.c.l.b16 %v150
    %v596 = vunpack.c.h.b16 %v150
    %v597 = vunpack.c.l.b16 %v151
    %v598 = vunpack.c.h.b16 %v151
    %v599 = vunpack.c.l.b16 %v152
    %v600 = vunpack.c.h.b16 %v152
    %v601 = vunpack.c.l.b16 %v153
    %v602 = vunpack.c.h.b16 %v153
    %v603 = vunpack.c.l.b16 %v154
    %v604 = vunpack.c.h.b16 %v154
    %v605 = vunpack.c.l.b16 %v155
    %v606 = vunpack.c.h.b16 %v155
    %v607 = vunpack.c.l.b16 %v156
    %v608 = vunpack.c.h.b16 %v156
    %v609 = vunpack.c.l.b16 %v157
    %v610 = vunpack.c.h.b16 %v157
    %v611 = vunpack.c.l.b16 %v158
    %v612 = vunpack.c.h.b16 %v158
    %v613 = vunpack.c.l.b16 %v159
    %v614 = vunpack.c.h.b16 %v159
    %v615 = vunpack.c.l.b16 %v160
    %v616 = vunpack.c.h.b16 %v160
    %v617 = vunpack.c.l.b16 %v161
    %v618 = vunpack.c.h.b16 %v161
    %v619 = vunpack.c.l.b16 %v162
    %v620 = vunpack.c.h.b16 %v162
    %v621 = vunpack.c.l.b16 %v163
    %v622 = vunpack.c.h.b16 %v163
    %v623 = vunpack.c.l.b16 %v164
    %v624 = vunpack.c.h.b16 %v164
    %v625 = vunpack.c.l.b16 %v165
    %v626 = vunpack.c.h.b16 %v165
    %v627 = vunpack.c.l.b16 %v166
    %v628 = vunpack.c.h.b16 %v166
    %v629 = vunpack.c.l.b16 %v167
    %v630 = vunpack.c.h.b16 %v167
    %v631 = vunpack.c.l.b16 %v168
    %v632 = vunpack.c.h.b16 %v168
    %v633 = vunpack.c.l.b16 %v169
    %v634 = vunpack.c.h.b16 %v169
    %v635 = vunpack.c.l.b16 %v170
    %v636 = vunpack.c.h.b16 %v170
    %v637 = vunpack.c.l.b16 %v171
    %v638 = vunpack.c.h.b16 %v171
    %v639 = vunpack.c.l.b16 %v172
    %v640 = vunpack.c.h.b16 %v172
    %v641 = vunpack.c.l.b16 %v173
    %v642 = vunpack.c.h.b16 %v173
    %v643 = vunpack.c.l.b16 %v174
    %v644 = vunpack.c.h.b16 %v174
    %v645 = vunpack.c.l.b16 %v175
    %v646 = vunpack.c.h.b16 %v175
    %v647 = vunpack.c.l.b16 %v176
    %v648 = vunpack.c.h.b16 %v176
    %v649 = vunpack.c.l.b16 %v177
    %v650 = vunpack.c.h.b16 %v177
    %v651 = vunpack.c.l.b16 %v178
    %v652 = vunpack.c.h.b16 %v178
    %v653 = vunpack.c.l.b16 %v179
    %v654 = vunpack.c.h.b16 %v179
    %v655 = vunpack.c.l.b16 %v180
    %v656 = vunpack.c.h.b16 %v180
    %v657 = vunpack.c.l.b16 %v181
    %v658 = vunpack.c.h.b16 %v181
    %v659 = vunpack.c.l.b16 %v182
    %v660 = vunpack.c.h.b16 %v182
    %v661 = vunpack.c.l.b16 %v183
    %v662 = vunpack.c.h.b16 %v183
    %v663 = vunpack.c.l.b16 %v184
    %v664 = vunpack.c.h.b16 %v184
    %v665 = vunpack.c.l.b16 %v185
    %v666 = vunpack.c.h.b16 %v185
    %v667 = vunpack.c.l.b16 %v186
    %v668 = vunpack.c.h.b16 %v186
    %v669 = vunpack.c.l.b16 %v187
    %v670 = vunpack.c.h.b16 %v187
    %v671 = vunpack.c.l.b16 %v188
    %v672 = vunpack.c.h.b16 %v188
    %v673 = vunpack.c.l.b16 %v189
    %v674 = vunpack.c.h.b16 %v189
    %v675 = vunpack.c.l.b16 %v190
    %v676 = vunpack.c.h.b16 %v190
    %v677 = vunpack.c.l.b16 %v191
    %v678 = vunpack.c.h.b16 %v191
    %v679 = vunpack.c.l.b16 %v192
    %v680 = vunpack.c.h.b16 %v192
    %v681 = vunpack.c.l.b16 %v193
    %v682 = vunpack.c.h.b16 %v193
    %v683 = vunpack.c.l.b16 %v194
    %v684 = vunpack.c.h.b16 %v194
    %v685 = vunpack.c.l.b16 %v195
    %v686 = vunpack.c.h.b16 %v195
    %v687 = vunpack.c.l.b16 %v196
    %v688 = vunpack.c.h.b16 %v196
    %v689 = vunpack.c.l.b16 %v197
    %v690 = vunpack.c.h.b16 %v197
    %v691 = vunpack.c.l.b16 %v198
    %v692 = vunpack.c.h.b16 %v198
    %v693 = vunpack.c.l.b16 %v199
    %v694 = vunpack.c.h.b16 %v199
    %v695 = vunpack.c.l.b16 %v200
    %v696 = vunpack.c.h.b16 %v200
    %v697 = vunpack.c.l.b16 %v201
    %v698 = vunpack.c.h.b16 %v201
    %v699 = vunpack.c.l.b16 %v202
    %v700 = vunpack.c.h.b16 %v202
    %v701 = vunpack.c.l.b16 %v203
    %v702 = vunpack.c.h.b16 %v203
    %v703 = vunpack.c.l.b16 %v204
    %v704 = vunpack.c.h.b16 %v204
    %v705 = vunpack.c.l.b16 %v205
    %v706 = vunpack.c.h.b16 %v205
    %v707 = vunpack.c.l.b16 %v206
    %v708 = vunpack.c.h.b16 %v206
    %v709 = vunpack.c.l.b16 %v207
    %v710 = vunpack.c.h.b16 %v207
    %v711 = vunpack.c.l.b16 %v208
    %v712 = vunpack.c.h.b16 %v208
    %v713 = vunpack.c.l.b16 %v209
    %v714 = vunpack.c.h.b16 %v209
    %v715 = vunpack.c.l.b16 %v210
    %v716 = vunpack.c.h.b16 %v210
    %v717 = vunpack.c.l.b16 %v211
    %v718 = vunpack.c.h.b16 %v211
    %v719 = vunpack.c.l.b16 %v212
    %v720 = vunpack.c.h.b16 %v212
    %v721 = vunpack.c.l.b16 %v213
    %v722 = vunpack.c.h.b16 %v213
    %v723 = vunpack.c.l.b16 %v214
    %v724 = vunpack.c.h.b16 %v214
    %v725 = vunpack.c.l.b16 %v215
    %v726 = vunpack.c.h.b16 %v215
    %v727 = vunpack.c.l.b16 %v216
    %v728 = vunpack.c.h.b16 %v216
    %v729 = vunpack.c.l.b16 %v217
    %v730 = vunpack.c.h.b16 %v217
    %v731 = vunpack.c.l.b16 %v218
    %v732 = vunpack.c.h.b16 %v218
    %v733 = vunpack.c.l.b16 %v219
    %v734 = vunpack.c.h.b16 %v219
    %v735 = vunpack.c.l.b16 %v220
    %v736 = vunpack.c.h.b16 %v220
    %v737 = vunpack.c.l.b16 %v221
    %v738 = vunpack.c.h.b16 %v221
    %v739 = vunpack.c.l.b16 %v222
    %v740 = vunpack.c.h.b16 %v222
    %v741 = vunpack.c.l.b16 %v223
    %v742 = vunpack.c.h.b16 %v223
    %v743 = vunpack.c.l.b16 %v224
    %v744 = vunpack.c.h.b16 %v224
    %v745 = vunpack.c.l.b16 %v225
    %v746 = vunpack.c.h.b16 %v225
    %v747 = vunpack.c.l.b16 %v226
    %v748 = vunpack.c.h.b16 %v226
    %v749 = vunpack.c.l.b16 %v227
    %v750 = vunpack.c.h.b16 %v227
    %v751 = vunpack.c.l.b16 %v228
    %v752 = vunpack.c.h.b16 %v228
    %v753 = vunpack.c.l.b16 %v229
    %v754 = vunpack.c.h.b16 %v229
    %v755 = vunpack.c.l.b16 %v230
    %v756 = vunpack.c.h.b16 %v230
    %v757 = vunpack.c.l.b16 %v231
    %v758 = vunpack.c.h.b16 %v231
    %v759 = vunpack.c.l.b16 %v232
    %v760 = vunpack.c.h.b16 %v232
    %v761 = vunpack.c.l.b16 %v233
    %v762 = vunpack.c.h.b16 %v233
    %v763 = vunpack.c.l.b16 %v234
    %v764 = vunpack.c.h.b16 %v234
    %v765 = vunpack.c.l.b16 %v235
    %v766 = vunpack.c.h.b16 %v235
    %v767 = vunpack.c.l.b16 %v236
    %v768 = vunpack.c.h.b16 %v236
    %v769 = vunpack.c.l.b16 %v237
    %v770 = vunpack.c.h.b16 %v237
    %v771 = vunpack.c.l.b16 %v238
    %v772 = vunpack.c.h.b16 %v238
    %v773 = vunpack.c.l.b16 %v239
    %v774 = vunpack.c.h.b16 %v239
    %v775 = vunpack.c.l.b16 %v240
    %v776 = vunpack.c.h.b16 %v240
    %v777 = vunpack.c.l.b16 %v241
    %v778 = vunpack.c.h.b16 %v241
    %v779 = vunpack.c.l.b16 %v242
    %v780 = vunpack.c.h.b16 %v242
    %v781 = vunpack.c.l.b16 %v243
    %v782 = vunpack.c.h.b16 %v243
    %v783 = vunpack.c.l.b16 %v244
    %v784 = vunpack.c.h.b16 %v244
    %v785 = vunpack.c.l.b16 %v245
    %v786 = vunpack.c.h.b16 %v245
    %v787 = vunpack.c.l.b16 %v246
    %v788 = vunpack.c.h.b16 %v246
    %v789 = vunpack.c.l.b16 %v247
    %v790 = vunpack.c.h.b16 %v247
    %v791 = vunpack.c.l.b16 %v248
    %v792 = vunpack.c.h.b16 %v248
    %v793 = vunpack.c.l.b16 %v249
    %v794 = vunpack.c.h.b16 %v249
    %v795 = vunpack.c.l.b16 %v250
    %v796 = vunpack.c.h.b16 %v250
    %v797 = vunpack.c.l.b16 %v251
    %v798 = vunpack.c.h.b16 %v251
    %v799 = vunpack.c.l.b16 %v252
    %v800 = vunpack.c.h.b16 %v252
    %v801 = vunpack.c.l.b16 %v253
    %v802 = vunpack.c.h.b16 %v253
    %v803 = vunpack.c.l.b16 %v254
    %v804 = vunpack.c.h.b16 %v254
    %v805 = vunpack.c.l.b16 %v255
    %v806 = vunpack.c.h.b16 %v255
    %v807 = vunpack.c.l.b16 %v256
    %v808 = vunpack.c.h.b16 %v256
    %v809 = vunpack.c.l.b16 %v257
    %v810 = vunpack.c.h.b16 %v257
    %v811 = vunpack.c.l.b16 %v258
    %v812 = vunpack.c.h.b16 %v258
    %v813 = vunpack.c.l.b16 %v259
    %v814 = vunpack.c.h.b16 %v259
    %v815 = vunpack.c.l.b16 %v260
    %v816 = vunpack.c.h.b16 %v260
    %v817 = vunpack.c.l.b16 %v261
    %v818 = vunpack.c.h.b16 %v261
    %v819 = vunpack.c.l.b16 %v262
    %v820 = vunpack.c.h.b16 %v262
    %v821 = vunpack.c.l.b16 %v263
    %v822 = vunpack.c.h.b16 %v263
    %v823 = vunpack.c.l.b16 %v264
    %v824 = vunpack.c.h.b16 %v264
    %v825 = vunpack.c.l.b16 %v265
    %v826 = vunpack.c.h.b16 %v265
    %v827 = vunpack.c.l.b16 %v266
    %v828 = vunpack.c.h.b16 %v266
    %v829 = vunpack.c.l.b16 %v267
    %v830 = vunpack.c.h.b16 %v267
    %v831 = vunpack.c.l.b16 %v268
    %v832 = vunpack.c.h.b16 %v268
    %v833 = vunpack.c.l.b16 %v269
    %v834 = vunpack.c.h.b16 %v269
    %v835 = vunpack.c.l.b16 %v270
    %v836 = vunpack.c.h.b16 %v270
    %v837 = vunpack.c.l.b16 %v271
    %v838 = vunpack.c.h.b16 %v271
    %v839 = vunpack.c.l.b16 %v272
    %v840 = vunpack.c.h.b16 %v272
    %v841 = vunpack.c.l.b16 %v273
    %v842 = vunpack.c.h.b16 %v273
    %v843 = vunpack.c.l.b16 %v274
    %v844 = vunpack.c.h.b16 %v274
    %v845 = vunpack.c.l.b16 %v275
    %v846 = vunpack.c.h.b16 %v275
    %v847 = vunpack.c.l.b16 %v276
    %v848 = vunpack.c.h.b16 %v276
    %v849 = vunpack.c.l.b16 %v277
    %v850 = vunpack.c.h.b16 %v277
    %v851 = vunpack.c.l.b16 %v278
    %v852 = vunpack.c.h.b16 %v278
    %v853 = vunpack.c.l.b16 %v279
    %v854 = vunpack.c.h.b16 %v279
    %v855 = vunpack.c.l.b16 %v280
    %v856 = vunpack.c.h.b16 %v280
    %v857 = vunpack.c.l.b16 %v281
    %v858 = vunpack.c.h.b16 %v281
    %v859 = vunpack.c.l.b16 %v282
    %v860 = vunpack.c.h.b16 %v282
    %v861 = vunpack.c.l.b16 %v283
    %v862 = vunpack.c.h.b16 %v283
    %v863 = vunpack.c.l.b16 %v284
    %v864 = vunpack.c.h.b16 %v284
    %v865 = vunpack.c.l.b16 %v285
    %v866 = vunpack.c.h.b16 %v285
    %v867 = vunpack.c.l.b16 %v286
    %v868 = vunpack.c.h.b16 %v286
    %v869 = vunpack.c.l.b16 %v287
    %v870 = vunpack.c.h.b16 %v287
    %v871 = vunpack.c.l.b16 %v288
    %v872 = vunpack.c.h.b16 %v288
    %v873 = vunpack.c.l.b16 %v289
    %v874 = vunpack.c.h.b16 %v289
    %v875 = vunpack.c.l.b16 %v290
    %v876 = vunpack.c.h.b16 %v290
    %v877 = vunpack.c.l.b16 %v291
    %v878 = vunpack.c.h.b16 %v291
    %v879 = vunpack.c.l.b16 %v292
    %v880 = vunpack.c.h.b16 %v292
    %v881 = vunpack.c.l.b16 %v293
    %v882 = vunpack.c.h.b16 %v293
    %v883 = vunpack.c.l.b16 %v294
    %v884 = vunpack.c.h.b16 %v294
    %v885 = vunpack.c.l.b16 %v295
    %v886 = vunpack.c.h.b16 %v295
    %v887 = vunpack.c.l.b16 %v296
    %v888 = vunpack.c.h.b16 %v296
    %v889 = vunpack.c.l.b16 %v297
    %v890 = vunpack.c.h.b16 %v297
    %v891 = vunpack.c.l.b16 %v298
    %v892 = vunpack.c.h.b16 %v298
    %v893 = vunpack.c.l.b16 %v299
    %v894 = vunpack.c.h.b16 %v299
    %v895 = vunpack.c.l.b16 %v300
    %v896 = vunpack.c.h.b16 %v300
    %v897 = vunpack.c.l.b16 %v301
    %v898 = vunpack.c.h.b16 %v301
    %v899 = vunpack.c.l.b16 %v302
    %v900 = vunpack.c.h.b16 %v302
    %v901 = vunpack.c.l.b16 %v303
    %v902 = vunpack.c.h.b16 %v303
    %v903 = vunpack.c.l.b16 %v304
    %v904 = vunpack.c.h.b16 %v304
    %v905 = vunpack.c.l.b16 %v305
    %v906 = vunpack.c.h.b16 %v305
    %v907 = vunpack.c.l.b16 %v306
    %v908 = vunpack.c.h.b16 %v306
    %v909 = vunpack.c.l.b16 %v307
    %v910 = vunpack.c.h.b16 %v307
    %v911 = vunpack.c.l.b16 %v308
    %v912 = vunpack.c.h.b16 %v308
    %v913 = vunpack.c.l.b16 %v309
    %v914 = vunpack.c.h.b16 %v309
    %v915 = vunpack.c.l.b16 %v310
    %v916 = vunpack.c.h.b16 %v310
    %v917 = vunpack.c.l.b16 %v311
    %v918 = vunpack.c.h.b16 %v311
    %v919 = vunpack.c.l.b16 %v312
    %v920 = vunpack.c.h.b16 %v312
    %v921 = vunpack.c.l.b16 %v313
    %v922 = vunpack.c.h.b16 %v313
    %v923 = vunpack.c.l.b16 %v314
    %v924 = vunpack.c.h.b16 %v314
    %v925 = vpack.c.b16 %v537, %v533
    %v926 = vpack.c.b16 %v538, %v534
    %v927 = vpack.c.b16 %v539, %v535
    %v928 = vpack.c.b16 %v540, %v536
    %v929 = vpack.c.b16 %v545, %v541
    %v930 = vpack.c.b16 %v546, %v542
    %v931 = vpack.c.b16 %v547, %v543
    %v932 = vpack.c.b16 %v548, %v544
    %v933 = vpack.c.b16 %v553, %v549
    %v934 = vpack.c.b16 %v554, %v550
    %v935 = vpack.c.b16 %v555, %v551
    %v936 = vpack.c.b16 %v556, %v552
    %v937 = vpack.c.b16 %v561, %v557
    %v938 = vpack.c.b16 %v562, %v558
    %v939 = vpack.c.b16 %v563, %v559
    %v940 = vpack.c.b16 %v564, %v560
    %v941 = vpack.c.b16 %v569, %v565
    %v942 = vpack.c.b16 %v570, %v566
    %v943 = vpack.c.b16 %v571, %v567
    %v944 = vpack.c.b16 %v572, %v568
    %v945 = vpack.c.b16 %v577, %v573
    %v946 = vpack.c.b16 %v578, %v574
    %v947 = vpack.c.b16 %v579, %v575
    %v948 = vpack.c.b16 %v580, %v576
    %v949 = vpack.c.b16 %v585, %v581
    %v950 = vpack.c.b16 %v586, %v582
    %v951 = vpack.c.b16 %v587, %v583
    %v952 = vpack.c.b16 %v588, %v584
    %v953 = vpack.c.b16 %v593, %v589
    %v954 = vpack.c.b16 %v594, %v590
    %v955 = vpack.c.b16 %v595, %v591
    %v956 = vpack.c.b16 %v596, %v592
    %v957 = vpack.c.b16 %v601, %v597
    %v958 = vpack.c.b16 %v602, %v598
    %v959 = vpack.c.b16 %v603, %v599
    %v960 = vpack.c.b16 %v604, %v600
    %v961 = vpack.c.b16 %v609, %v605
    %v962 = vpack.c.b16 %v610, %v606
    %v963 = vpack.c.b16 %v611, %v607
    %v964 = vpack.c.b16 %v612, %v608
    %v965 = vpack.c.b16 %v617, %v613
    %v966 = vpack.c.b16 %v618, %v614
    %v967 = vpack.c.b16 %v619, %v615
    %v968 = vpack.c.b16 %v620, %v616
    %v969 = vpack.c.b16 %v625, %v621
    %v970 = vpack.c.b16 %v626, %v622
    %v971 = vpack.c.b16 %v627, %v623
    %v972 = vpack.c.b16 %v628, %v624
    %v973 = vpack.c.b16 %v633, %v629
    %v974 = vpack.c.b16 %v634, %v630
    %v975 = vpack.c.b16 %v635, %v631
    %v976 = vpack.c.b16 %v636, %v632
    %v977 = vpack.c.b16 %v641, %v637
    %v978 = vpack.c.b16 %v642, %v638
    %v979 = vpack.c.b16 %v643, %v639
    %v980 = vpack.c.b16 %v644, %v640
    %v981 = vpack.c.b16 %v649, %v645
    %v982 = vpack.c.b16 %v650, %v646
    %v983 = vpack.c.b16 %v651, %v647
    %v984 = vpack.c.b16 %v652, %v648
    %v985 = vpack.c.b16 %v657, %v653
    %v986 = vpack.c.b16 %v658, %v654
    %v987 = vpack.c.b16 %v659, %v655
    %v988 = vpack.c.b16 %v660, %v656
    %v989 = vpack.c.b16 %v665, %v661
    %v990 = vpack.c.b16 %v666, %v662
    %v991 = vpack.c.b16 %v667, %v663
    %v992 = vpack.c.b16 %v668, %v664
    %v993 = vpack.c.b16 %v673, %v669
    %v994 = vpack.c.b16 %v674, %v670
    %v995 = vpack.c.b16 %v675, %v671
    %v996 = vpack.c.b16 %v676, %v672
    %v997 = vpack.c.b16 %v681, %v677
    %v998 = vpack.c.b16 %v682, %v678
    %v999 = vpack.c.b16 %v683, %v679
    %v1000 = vpack.c.b16 %v684, %v680
    %v1001 = vpack.c.b16 %v689, %v685
    %v1002 = vpack.c.b16 %v690, %v686
    %v1003 = vpack.c.b16 %v691, %v687
    %v1004 = vpack.c.b16 %v692, %v688
    %v1005 = vpack.c.b16 %v697, %v693
    %v1006 = vpack.c.b16 %v698, %v694
    %v1007 = vpack.c.b16 %v699, %v695
    %v1008 = vpack.c.b16 %v700, %v696
    %v1009 = vpack.c.b16 %v705, %v701
    %v1010 = vpack.c.b16 %v706, %v702
    %v1011 = vpack.c.b16 %v707, %v703
    %v1012 = vpack.c.b16 %v708, %v704
    %v1013 = vpack.c.b16 %v713, %v709
    %v1014 = vpack.c.b16 %v714, %v710
    %v1015 = vpack.c.b16 %v715, %v711
    %v1016 = vpack.c.b16 %v716, %v712
    %v1017 = vpack.c.b16 %v721, %v717
    %v1018 = vpack.c.b16 %v722, %v718
    %v1019 = vpack.c.b16 %v723, %v719
    %v1020 = vpack.c.b16 %v724, %v720
    %v1021 = vpack.c.b16 %v729, %v725
    %v1022 = vpack.c.b16 %v730, %v726
    %v1023 = vpack.c.b16 %v731, %v727
    %v1024 = vpack.c.b16 %v732, %v728
    %v1025 = vpack.c.b16 %v737, %v733
    %v1026 = vpack.c.b16 %v738, %v734
    %v1027 = vpack.c.b16 %v739, %v735
    %v1028 = vpack.c.b16 %v740, %v736
    %v1029 = vpack.c.b16 %v745, %v741
    %v1030 = vpack.c.b16 %v746, %v742
    %v1031 = vpack.c.b16 %v747, %v743
    %v1032 = vpack.c.b16 %v748, %v744
    %v1033 = vpack.c.b16 %v753, %v749
    %v1034 = vpack.c.b16 %v754, %v750
    %v1035 = vpack.c.b16 %v755, %v751
    %v1036 = vpack.c.b16 %v756, %v752
    %v1037 = vpack.c.b16 %v761, %v757
    %v1038 = vpack.c.b16 %v762, %v758
    %v1039 = vpack.c.b16 %v763, %v759
    %v1040 = vpack.c.b16 %v764, %v760
    %v1041 = vpack.c.b16 %v769, %v765
    %v1042 = vpack.c.b16 %v770, %v766
    %v1043 = vpack.c.b16 %v771, %v767
    %v1044 = vpack.c.b16 %v772, %v768
    %v1045 = vpack.c.b16 %v777, %v773
    %v1046 = vpack.c.b16 %v778, %v774
    %v1047 = vpack.c.b16 %v779, %v775
    %v1048 = vpack.c.b16 %v780, %v776
    %v1049 = vpack.c.b16 %v785, %v781
    %v1050 = vpack.c.b16 %v786, %v782
    %v1051 = vpack.c.b16 %v787, %v783
    %v1052 = vpack.c.b16 %v788, %v784
    %v1053 = vpack.c.b16 %v793, %v789
    %v1054 = vpack.c.b16 %v794, %v790
    %v1055 = vpack.c.b16 %v795, %v791
    %v1056 = vpack.c.b16 %v796, %v792
    %v1057 = vpack.c.b16 %v801, %v797
    %v1058 = vpack.c.b16 %v802, %v798
    %v1059 = vpack.c.b16 %v803, %v799
    %v1060 = vpack.c.b16 %v804, %v800
    %v1061 = vpack.c.b16 %v809, %v805
    %v1062 = vpack.c.b16 %v810, %v806
    %v1063 = vpack.c.b16 %v811, %v807
    %v1064 = vpack.c.b16 %v812, %v808
    %v1065 = vpack.c.b16 %v817, %v813
    %v1066 = vpack.c.b16 %v818, %v814
    %v1067 = vpack.c.b16 %v819, %v815
    %v1068 = vpack.c.b16 %v820, %v816
    %v1069 = vpack.c.b16 %v825, %v821
    %v1070 = vpack.c.b16 %v826, %v822
    %v1071 = vpack.c.b16 %v827, %v823
    %v1072 = vpack.c.b16 %v828, %v824
    %v1073 = vpack.c.b16 %v833, %v829
    %v1074 = vpack.c.b16 %v834, %v830
    %v1075 = vpack.c.b16 %v835, %v831
    %v1076 = vpack.c.b16 %v836, %v832
    %v1077 = vpack.c.b16 %v841, %v837
    %v1078 = vpack.c.b16 %v842, %v838
    %v1079 = vpack.c.b16 %v843, %v839
    %v1080 = vpack.c.b16 %v844, %v840
    %v1081 = vpack.c.b16 %v849, %v845
    %v1082 = vpack.c.b16 %v850, %v846
    %v1083 = vpack.c.b16 %v851, %v847
    %v1084 = vpack.c.b16 %v852, %v848
    %v1085 = vpack.c.b16 %v857, %v853
    %v1086 = vpack.c.b16 %v858, %v854
    %v1087 = vpack.c.b16 %v859, %v855
    %v1088 = vpack.c.b16 %v860, %v856
    %v1089 = vpack.c.b16 %v865, %v861
    %v1090 = vpack.c.b16 %v866, %v862
    %v1091 = vpack.c.b16 %v867, %v863
    %v1092 = vpack.c.b16 %v868, %v864
    %v1093 = vpack.c.b16 %v873, %v869
    %v1094 = vpack.c.b16 %v874, %v870
    %v1095 = vpack.c.b16 %v875, %v871
    %v1096 = vpack.c.b16 %v876, %v872
    %v1097 = vpack.c.b16 %v881, %v877
    %v1098 = vpack.c.b16 %v882, %v878
    %v1099 = vpack.c.b16 %v883, %v879
    %v1100 = vpack.c.b16 %v884, %v880
    %v1101 = vpack.c.b16 %v889, %v885
    %v1102 = vpack.c.b16 %v890, %v886
    %v1103 = vpack.c.b16 %v891, %v887
    %v1104 = vpack.c.b16 %v892, %v888
    %v1105 = vpack.c.b16 %v897, %v893
    %v1106 = vpack.c.b16 %v898, %v894
    %v1107 = vpack.c.b16 %v899, %v895
    %v1108 = vpack.c.b16 %v900, %v896
    %v1109 = vpack.c.b16 %v905, %v901
    %v1110 = vpack.c.b16 %v906, %v902
    %v1111 = vpack.c.b16 %v907, %v903
    %v1112 = vpack.c.b16 %v908, %v904
    %v1113 = vpack.c.b16 %v913, %v909
    %v1114 = vpack.c.b16 %v914, %v910
    %v1115 = vpack.c.b16 %v915, %v911
    %v1116 = vpack.c.b16 %v916, %v912
    %v1117 = vpack.c.b16 %v921, %v917
    %v1118 = vpack.c.b16 %v922, %v918
    %v1119 = vpack.c.b16 %v923, %v919
    %v1120 = vpack.c.b16 %v924, %v920
    %vm1317 = vcmask 130048
    %v1319 = vsel %vm1317, %v118, 0
    %1321 = vmatprep.subr.bf16.mxu0 %v954
    %1322 = vmatpush1.bf16.msra.mxu0 %v953
    %1323 = vmatprep.subr.bf16.mxu0 %v950
    %1324 = vmatpush1.bf16.msra.mxu0 %v949
    %1325 = vmatprep.subr.bf16.mxu0 %v946
    %1326 = vmatpush1.bf16.msra.mxu0 %v945
    %1327 = vmatprep.subr.bf16.mxu0 %v942
    %1328 = vmatpush1.bf16.msra.mxu0 %v941
    %1329 = vmatprep.subr.bf16.mxu0 %v938
    %1330 = vmatpush1.bf16.msra.mxu0 %v937
    %1331 = vmatprep.subr.bf16.mxu0 %v934
    %1332 = vmatpush1.bf16.msra.mxu0 %v933
    %1333 = vmatprep.subr.bf16.mxu0 %v930
    %1334 = vmatpush1.bf16.msra.mxu0 %v929
    %1335 = vmatprep.subr.bf16.mxu0 %v926
    %1336 = vmatpush1.bf16.msra.mxu0 %v925
    %1337 = vmatprep.subr.bf16.mxu0 %v986
    %1338 = vmatpush2.bf16.msra.mxu0 %v985
    %1339 = vmatprep.subr.bf16.mxu0 %v982
    %1340 = vmatpush2.bf16.msra.mxu0 %v981
    %1341 = vmatprep.subr.bf16.mxu0 %v978
    %1342 = vmatpush2.bf16.msra.mxu0 %v977
    %1343 = vmatprep.subr.bf16.mxu0 %v974
    %1344 = vmatpush2.bf16.msra.mxu0 %v973
    %1345 = vmatprep.subr.bf16.mxu0 %v970
    %1346 = vmatpush2.bf16.msra.mxu0 %v969
    %1347 = vmatprep.subr.bf16.mxu0 %v966
    %1348 = vmatpush2.bf16.msra.mxu0 %v965
    %1349 = vmatprep.subr.bf16.mxu0 %v962
    %1350 = vmatpush2.bf16.msra.mxu0 %v961
    %1351 = vmatprep.subr.bf16.mxu0 %v958
    %1352 = vmatpush2.bf16.msra.mxu0 %v957
    %1353 = vmatprep.mubr.bf16.mxu0 %v113
    %1354 = vmatmul.mubr.bf16.gmra.mxu0 %v112
    %v1355 = vpop.f32.mrf.mxu0
    %v1356 = vadd.f32 %v320, %v1355
    %v1357 = vpop.f32.mrf.mxu0
    %v1358 = vadd.f32 %v324, %v1357
    %v1359 = vpop.f32.mrf.mxu0
    %v1360 = vpop.f32.mrf.mxu0
    %1361 = vdwg.mxu0
    %1362 = vmatprep.subr.bf16.mxu0 %v1018
    %1363 = vmatpush1.bf16.msra.mxu0 %v1017
    %1364 = vmatprep.subr.bf16.mxu0 %v1014
    %1365 = vmatpush1.bf16.msra.mxu0 %v1013
    %1366 = vmatprep.subr.bf16.mxu0 %v1010
    %1367 = vmatpush1.bf16.msra.mxu0 %v1009
    %1368 = vmatprep.subr.bf16.mxu0 %v1006
    %1369 = vmatpush1.bf16.msra.mxu0 %v1005
    %1370 = vmatprep.subr.bf16.mxu0 %v1002
    %1371 = vmatpush1.bf16.msra.mxu0 %v1001
    %1372 = vmatprep.subr.bf16.mxu0 %v998
    %1373 = vmatpush1.bf16.msra.mxu0 %v997
    %1374 = vmatprep.subr.bf16.mxu0 %v994
    %1375 = vmatpush1.bf16.msra.mxu0 %v993
    %1376 = vmatprep.subr.bf16.mxu0 %v990
    %1377 = vmatpush1.bf16.msra.mxu0 %v989
    %1378 = vmatprep.subr.bf16.mxu0 %v1050
    %1379 = vmatpush2.bf16.msra.mxu0 %v1049
    %1380 = vmatprep.subr.bf16.mxu0 %v1046
    %1381 = vmatpush2.bf16.msra.mxu0 %v1045
    %1382 = vmatprep.subr.bf16.mxu0 %v1042
    %1383 = vmatpush2.bf16.msra.mxu0 %v1041
    %1384 = vmatprep.subr.bf16.mxu0 %v1038
    %1385 = vmatpush2.bf16.msra.mxu0 %v1037
    %1386 = vmatprep.subr.bf16.mxu0 %v1034
    %1387 = vmatpush2.bf16.msra.mxu0 %v1033
    %1388 = vmatprep.subr.bf16.mxu0 %v1030
    %1389 = vmatpush2.bf16.msra.mxu0 %v1029
    %1390 = vmatprep.subr.bf16.mxu0 %v1026
    %1391 = vmatpush2.bf16.msra.mxu0 %v1025
    %1392 = vmatprep.subr.bf16.mxu0 %v1022
    %1393 = vmatpush2.bf16.msra.mxu0 %v1021
    %1394 = vmatprep.mubr.bf16.mxu0 %v115
    %1395 = vmatmul.mubr.bf16.gmra.mxu0 %v114
    %v1396 = vpop.f32.mrf.mxu0
    %v1397 = vadd.f32 %v1356, %v1396
    %v1398 = vpop.f32.mrf.mxu0
    %v1399 = vadd.f32 %v1358, %v1398
    %v1400 = vpop.f32.mrf.mxu0
    %v1401 = vpop.f32.mrf.mxu0
    %1402 = vdwg.mxu0
    %1403 = vmatprep.subr.bf16.mxu0 %v1082
    %1404 = vmatpush1.bf16.msra.mxu0 %v1081
    %1405 = vmatprep.subr.bf16.mxu0 %v1078
    %1406 = vmatpush1.bf16.msra.mxu0 %v1077
    %1407 = vmatprep.subr.bf16.mxu0 %v1074
    %1408 = vmatpush1.bf16.msra.mxu0 %v1073
    %1409 = vmatprep.subr.bf16.mxu0 %v1070
    %1410 = vmatpush1.bf16.msra.mxu0 %v1069
    %1411 = vmatprep.subr.bf16.mxu0 %v1066
    %1412 = vmatpush1.bf16.msra.mxu0 %v1065
    %1413 = vmatprep.subr.bf16.mxu0 %v1062
    %1414 = vmatpush1.bf16.msra.mxu0 %v1061
    %1415 = vmatprep.subr.bf16.mxu0 %v1058
    %1416 = vmatpush1.bf16.msra.mxu0 %v1057
    %1417 = vmatprep.subr.bf16.mxu0 %v1054
    %1418 = vmatpush1.bf16.msra.mxu0 %v1053
    %1419 = vmatprep.subr.bf16.mxu0 %v1114
    %1420 = vmatpush2.bf16.msra.mxu0 %v1113
    %1421 = vmatprep.subr.bf16.mxu0 %v1110
    %1422 = vmatpush2.bf16.msra.mxu0 %v1109
    %1423 = vmatprep.subr.bf16.mxu0 %v1106
    %1424 = vmatpush2.bf16.msra.mxu0 %v1105
    %1425 = vmatprep.subr.bf16.mxu0 %v1102
    %1426 = vmatpush2.bf16.msra.mxu0 %v1101
    %1427 = vmatprep.subr.bf16.mxu0 %v1098
    %1428 = vmatpush2.bf16.msra.mxu0 %v1097
    %1429 = vmatprep.subr.bf16.mxu0 %v1094
    %1430 = vmatpush2.bf16.msra.mxu0 %v1093
    %1431 = vmatprep.subr.bf16.mxu0 %v1090
    %1432 = vmatpush2.bf16.msra.mxu0 %v1089
    %1433 = vmatprep.subr.bf16.mxu0 %v1086
    %1434 = vmatpush2.bf16.msra.mxu0 %v1085
    %1435 = vmatprep.mubr.bf16.mxu0 %v117
    %1436 = vmatmul.mubr.bf16.gmra.mxu0 %v116
    %v1437 = vpop.f32.mrf.mxu0
    %v1438 = vadd.f32 %v1397, %v1437
    %v1439 = vpop.f32.mrf.mxu0
    %v1440 = vadd.f32 %v1399, %v1439
    %v1441 = vpop.f32.mrf.mxu0
    %v1442 = vpop.f32.mrf.mxu0
    %1443 = vdwg.mxu0
    %1444 = vmatprep.subr.bf16.mxu0 0
    %1445 = vmatpush1.bf16.msra.mxu0 0
    %1446 = vmatprep.subr.bf16.mxu0 0
    %1447 = vmatpush1.bf16.msra.mxu0 0
    %1448 = vmatprep.subr.bf16.mxu0 0
    %1449 = vmatpush1.bf16.msra.mxu0 0
    %1450 = vmatprep.subr.bf16.mxu0 0
    %1451 = vmatpush1.bf16.msra.mxu0 0
    %1452 = vmatprep.subr.bf16.mxu0 0
    %1453 = vmatpush1.bf16.msra.mxu0 0
    %1454 = vmatprep.subr.bf16.mxu0 0
    %1455 = vmatpush1.bf16.msra.mxu0 0
    %1456 = vmatprep.subr.bf16.mxu0 0
    %1457 = vmatpush1.bf16.msra.mxu0 0
    %1458 = vmatprep.subr.bf16.mxu0 %v1118
    %1459 = vmatpush1.bf16.msra.mxu0 %v1117
    %1460 = vmatprep.subr.bf16.mxu0 0
    %1461 = vmatpush2.bf16.msra.mxu0 0
    %1462 = vmatprep.subr.bf16.mxu0 0
    %1463 = vmatpush2.bf16.msra.mxu0 0
    %1464 = vmatprep.subr.bf16.mxu0 0
    %1465 = vmatpush2.bf16.msra.mxu0 0
    %1466 = vmatprep.subr.bf16.mxu0 0
    %1467 = vmatpush2.bf16.msra.mxu0 0
    %1468 = vmatprep.subr.bf16.mxu0 0
    %1469 = vmatpush2.bf16.msra.mxu0 0
    %1470 = vmatprep.subr.bf16.mxu0 0
    %1471 = vmatpush2.bf16.msra.mxu0 0
    %1472 = vmatprep.subr.bf16.mxu0 0
    %1473 = vmatpush2.bf16.msra.mxu0 0
    %1474 = vmatprep.subr.bf16.mxu0 0
    %1475 = vmatpush2.bf16.msra.mxu0 0
    %1476 = vmatprep.mubr.bf16.mxu0 0
    %1477 = vmatmul.mubr.bf16.gmra.mxu0 %v1319
    %v1478 = vpop.f32.mrf.mxu0
    %v1479 = vadd.f32 %v1438, %v1478
    %v1480 = vpop.f32.mrf.mxu0
    %v1481 = vadd.f32 %v1440, %v1480
    %v1482 = vpop.f32.mrf.mxu0
    %v1483 = vpop.f32.mrf.mxu0
    %1484 = vdwg.mxu0
    %1485 = vmatprep.subr.bf16.mxu0 %v956
    %1486 = vmatpush1.bf16.msra.mxu0 %v955
    %1487 = vmatprep.subr.bf16.mxu0 %v952
    %1488 = vmatpush1.bf16.msra.mxu0 %v951
    %1489 = vmatprep.subr.bf16.mxu0 %v948
    %1490 = vmatpush1.bf16.msra.mxu0 %v947
    %1491 = vmatprep.subr.bf16.mxu0 %v944
    %1492 = vmatpush1.bf16.msra.mxu0 %v943
    %1493 = vmatprep.subr.bf16.mxu0 %v940
    %1494 = vmatpush1.bf16.msra.mxu0 %v939
    %1495 = vmatprep.subr.bf16.mxu0 %v936
    %1496 = vmatpush1.bf16.msra.mxu0 %v935
    %1497 = vmatprep.subr.bf16.mxu0 %v932
    %1498 = vmatpush1.bf16.msra.mxu0 %v931
    %1499 = vmatprep.subr.bf16.mxu0 %v928
    %1500 = vmatpush1.bf16.msra.mxu0 %v927
    %1501 = vmatprep.subr.bf16.mxu0 %v988
    %1502 = vmatpush2.bf16.msra.mxu0 %v987
    %1503 = vmatprep.subr.bf16.mxu0 %v984
    %1504 = vmatpush2.bf16.msra.mxu0 %v983
    %1505 = vmatprep.subr.bf16.mxu0 %v980
    %1506 = vmatpush2.bf16.msra.mxu0 %v979
    %1507 = vmatprep.subr.bf16.mxu0 %v976
    %1508 = vmatpush2.bf16.msra.mxu0 %v975
    %1509 = vmatprep.subr.bf16.mxu0 %v972
    %1510 = vmatpush2.bf16.msra.mxu0 %v971
    %1511 = vmatprep.subr.bf16.mxu0 %v968
    %1512 = vmatpush2.bf16.msra.mxu0 %v967
    %1513 = vmatprep.subr.bf16.mxu0 %v964
    %1514 = vmatpush2.bf16.msra.mxu0 %v963
    %1515 = vmatprep.subr.bf16.mxu0 %v960
    %1516 = vmatpush2.bf16.msra.mxu0 %v959
    %1517 = vmatprep.mubr.bf16.mxu0 %v113
    %1518 = vmatmul.mubr.bf16.gmra.mxu0 %v112
    %v1519 = vpop.f32.mrf.mxu0
    %v1520 = vadd.f32 %v328, %v1519
    %v1521 = vpop.f32.mrf.mxu0
    %v1522 = vadd.f32 %v332, %v1521
    %v1523 = vpop.f32.mrf.mxu0
    %v1524 = vpop.f32.mrf.mxu0
    %1525 = vdwg.mxu0
    %1526 = vmatprep.subr.bf16.mxu0 %v1020
    %1527 = vmatpush1.bf16.msra.mxu0 %v1019
    %1528 = vmatprep.subr.bf16.mxu0 %v1016
    %1529 = vmatpush1.bf16.msra.mxu0 %v1015
    %1530 = vmatprep.subr.bf16.mxu0 %v1012
    %1531 = vmatpush1.bf16.msra.mxu0 %v1011
    %1532 = vmatprep.subr.bf16.mxu0 %v1008
    %1533 = vmatpush1.bf16.msra.mxu0 %v1007
    %1534 = vmatprep.subr.bf16.mxu0 %v1004
    %1535 = vmatpush1.bf16.msra.mxu0 %v1003
    %1536 = vmatprep.subr.bf16.mxu0 %v1000
    %1537 = vmatpush1.bf16.msra.mxu0 %v999
    %1538 = vmatprep.subr.bf16.mxu0 %v996
    %1539 = vmatpush1.bf16.msra.mxu0 %v995
    %1540 = vmatprep.subr.bf16.mxu0 %v992
    %1541 = vmatpush1.bf16.msra.mxu0 %v991
    %1542 = vmatprep.subr.bf16.mxu0 %v1052
    %1543 = vmatpush2.bf16.msra.mxu0 %v1051
    %1544 = vmatprep.subr.bf16.mxu0 %v1048
    %1545 = vmatpush2.bf16.msra.mxu0 %v1047
    %1546 = vmatprep.subr.bf16.mxu0 %v1044
    %1547 = vmatpush2.bf16.msra.mxu0 %v1043
    %1548 = vmatprep.subr.bf16.mxu0 %v1040
    %1549 = vmatpush2.bf16.msra.mxu0 %v1039
    %1550 = vmatprep.subr.bf16.mxu0 %v1036
    %1551 = vmatpush2.bf16.msra.mxu0 %v1035
    %1552 = vmatprep.subr.bf16.mxu0 %v1032
    %1553 = vmatpush2.bf16.msra.mxu0 %v1031
    %1554 = vmatprep.subr.bf16.mxu0 %v1028
    %1555 = vmatpush2.bf16.msra.mxu0 %v1027
    %1556 = vmatprep.subr.bf16.mxu0 %v1024
    %1557 = vmatpush2.bf16.msra.mxu0 %v1023
    %1558 = vmatprep.mubr.bf16.mxu0 %v115
    %1559 = vmatmul.mubr.bf16.gmra.mxu0 %v114
    %v1560 = vpop.f32.mrf.mxu0
    %v1561 = vadd.f32 %v1520, %v1560
    %v1562 = vpop.f32.mrf.mxu0
    %v1563 = vadd.f32 %v1522, %v1562
    %v1564 = vpop.f32.mrf.mxu0
    %v1565 = vpop.f32.mrf.mxu0
    %1566 = vdwg.mxu0
    %1567 = vmatprep.subr.bf16.mxu0 %v1084
    %1568 = vmatpush1.bf16.msra.mxu0 %v1083
    %1569 = vmatprep.subr.bf16.mxu0 %v1080
    %1570 = vmatpush1.bf16.msra.mxu0 %v1079
    %1571 = vmatprep.subr.bf16.mxu0 %v1076
    %1572 = vmatpush1.bf16.msra.mxu0 %v1075
    %1573 = vmatprep.subr.bf16.mxu0 %v1072
    %1574 = vmatpush1.bf16.msra.mxu0 %v1071
    %1575 = vmatprep.subr.bf16.mxu0 %v1068
    %1576 = vmatpush1.bf16.msra.mxu0 %v1067
    %1577 = vmatprep.subr.bf16.mxu0 %v1064
    %1578 = vmatpush1.bf16.msra.mxu0 %v1063
    %1579 = vmatprep.subr.bf16.mxu0 %v1060
    %1580 = vmatpush1.bf16.msra.mxu0 %v1059
    %1581 = vmatprep.subr.bf16.mxu0 %v1056
    %1582 = vmatpush1.bf16.msra.mxu0 %v1055
    %1583 = vmatprep.subr.bf16.mxu0 %v1116
    %1584 = vmatpush2.bf16.msra.mxu0 %v1115
    %1585 = vmatprep.subr.bf16.mxu0 %v1112
    %1586 = vmatpush2.bf16.msra.mxu0 %v1111
    %1587 = vmatprep.subr.bf16.mxu0 %v1108
    %1588 = vmatpush2.bf16.msra.mxu0 %v1107
    %1589 = vmatprep.subr.bf16.mxu0 %v1104
    %1590 = vmatpush2.bf16.msra.mxu0 %v1103
    %1591 = vmatprep.subr.bf16.mxu0 %v1100
    %1592 = vmatpush2.bf16.msra.mxu0 %v1099
    %1593 = vmatprep.subr.bf16.mxu0 %v1096
    %1594 = vmatpush2.bf16.msra.mxu0 %v1095
    %1595 = vmatprep.subr.bf16.mxu0 %v1092
    %1596 = vmatpush2.bf16.msra.mxu0 %v1091
    %1597 = vmatprep.subr.bf16.mxu0 %v1088
    %1598 = vmatpush2.bf16.msra.mxu0 %v1087
    %1599 = vmatprep.mubr.bf16.mxu0 %v117
    %1600 = vmatmul.mubr.bf16.gmra.mxu0 %v116
    %v1601 = vpop.f32.mrf.mxu0
    %v1602 = vadd.f32 %v1561, %v1601
    %v1603 = vpop.f32.mrf.mxu0
    %v1604 = vadd.f32 %v1563, %v1603
    %v1605 = vpop.f32.mrf.mxu0
    %v1606 = vpop.f32.mrf.mxu0
    %1607 = vdwg.mxu0
    %1608 = vmatprep.subr.bf16.mxu0 0
    %1609 = vmatpush1.bf16.msra.mxu0 0
    %1610 = vmatprep.subr.bf16.mxu0 0
    %1611 = vmatpush1.bf16.msra.mxu0 0
    %1612 = vmatprep.subr.bf16.mxu0 0
    %1613 = vmatpush1.bf16.msra.mxu0 0
    %1614 = vmatprep.subr.bf16.mxu0 0
    %1615 = vmatpush1.bf16.msra.mxu0 0
    %1616 = vmatprep.subr.bf16.mxu0 0
    %1617 = vmatpush1.bf16.msra.mxu0 0
    %1618 = vmatprep.subr.bf16.mxu0 0
    %1619 = vmatpush1.bf16.msra.mxu0 0
    %1620 = vmatprep.subr.bf16.mxu0 0
    %1621 = vmatpush1.bf16.msra.mxu0 0
    %1622 = vmatprep.subr.bf16.mxu0 %v1120
    %1623 = vmatpush1.bf16.msra.mxu0 %v1119
    %1624 = vmatprep.subr.bf16.mxu0 0
    %1625 = vmatpush2.bf16.msra.mxu0 0
    %1626 = vmatprep.subr.bf16.mxu0 0
    %1627 = vmatpush2.bf16.msra.mxu0 0
    %1628 = vmatprep.subr.bf16.mxu0 0
    %1629 = vmatpush2.bf16.msra.mxu0 0
    %1630 = vmatprep.subr.bf16.mxu0 0
    %1631 = vmatpush2.bf16.msra.mxu0 0
    %1632 = vmatprep.subr.bf16.mxu0 0
    %1633 = vmatpush2.bf16.msra.mxu0 0
    %1634 = vmatprep.subr.bf16.mxu0 0
    %1635 = vmatpush2.bf16.msra.mxu0 0
    %1636 = vmatprep.subr.bf16.mxu0 0
    %1637 = vmatpush2.bf16.msra.mxu0 0
    %1638 = vmatprep.subr.bf16.mxu0 0
    %1639 = vmatpush2.bf16.msra.mxu0 0
    %1640 = vmatprep.mubr.bf16.mxu0 0
    %1641 = vmatmul.mubr.bf16.gmra.mxu0 %v1319
    %v1642 = vpop.f32.mrf.mxu0
    %v1643 = vadd.f32 %v1602, %v1642
    %v1644 = vpop.f32.mrf.mxu0
    %v1645 = vadd.f32 %v1604, %v1644
    %v1646 = vpop.f32.mrf.mxu0
    %v1647 = vpop.f32.mrf.mxu0
    %1648 = vdwg.mxu0
    %vm1649 = vcmp.ge.f32.partialorder %v1479, 0.0
    %vm1650 = vcmp.ge.f32.partialorder %v1481, 0.0
    %vm1651 = vcmp.ge.f32.partialorder %v1643, 0.0
    %vm1652 = vcmp.ge.f32.partialorder %v1645, 0.0
    %v1653 = vmul.f32 %v1479, 0.2
    %v1654 = vmul.f32 %v1481, 0.2
    %v1655 = vmul.f32 %v1643, 0.2
    %v1656 = vmul.f32 %v1645, 0.2
    %v1657 = vsel %vm1649, %v1479, %v1653
    %v1658 = vsel %vm1650, %v1481, %v1654
    %v1659 = vsel %vm1651, %v1643, %v1655
    %v1660 = vsel %vm1652, %v1645, %v1656
    %v1661 = vpack.c.bf16 %v1657, %v1657
    %v1662 = vpack.c.bf16 %v1658, %v1658
    %v1663 = vpack.c.bf16 %v1659, %v1659
    %v1664 = vpack.c.bf16 %v1660, %v1660
    %v1665 = vld [vmem:[#allocation8] sm:$0xff]
    %v1666 = vld [vmem:[#allocation8 + $0x8] sm:$0xff]
    %v1667 = vld [vmem:[#allocation8 + $0x10] sm:$0xff]
    %v1668 = vld [vmem:[#allocation8 + $0x18] sm:$0xff]
    %v1669 = vld [vmem:[#allocation8 + $0x20] sm:$0xff]
    %v1670 = vld [vmem:[#allocation8 + $0x28] sm:$0xff]
    %v1671 = vld [vmem:[#allocation8 + $0x30] sm:$0xff]
    %v1672 = vld [vmem:[#allocation8 + $0x38] sm:$0xff]
    %v1673 = vld [vmem:[#allocation8 + $0x40] sm:$0xff]
    %v1674 = vld [vmem:[#allocation8 + $0x48] sm:$0xff]
    %v1675 = vld [vmem:[#allocation8 + $0x50] sm:$0xff]
    %v1676 = vld [vmem:[#allocation8 + $0x58] sm:$0xff]
    %v1677 = vld [vmem:[#allocation8 + $0x60] sm:$0xff]
    %v1678 = vld [vmem:[#allocation8 + $0x68] sm:$0xff]
    %v1679 = vld [vmem:[#allocation8 + $0x70] sm:$0xff]
    %v1680 = vld [vmem:[#allocation8 + $0x78] sm:$0xff]
    %v1681 = vld [vmem:[#allocation8 + $0x80] sm:$0xff]
    %v1682 = vld [vmem:[#allocation8 + $0x88] sm:$0xff]
    %v1683 = vld [vmem:[#allocation8 + $0x90] sm:$0xff]
    %v1684 = vld [vmem:[#allocation8 + $0x98] sm:$0xff]
    %v1685 = vld [vmem:[#allocation8 + $0xa0] sm:$0xff]
    %v1686 = vld [vmem:[#allocation8 + $0xa8] sm:$0xff]
    %v1687 = vld [vmem:[#allocation8 + $0xb0] sm:$0xff]
    %v1688 = vld [vmem:[#allocation8 + $0xb8] sm:$0xff]
    %v1689 = vld [vmem:[#allocation8 + $0xc0] sm:$0xff]
    %v1690 = vld [vmem:[#allocation8 + $0xc8] sm:$0xff]
    %v1691 = vld [vmem:[#allocation8 + $0xd0] sm:$0xff]
    %v1692 = vld [vmem:[#allocation8 + $0xd8] sm:$0xff]
    %v1693 = vld [vmem:[#allocation8 + $0xe0] sm:$0xff]
    %v1694 = vld [vmem:[#allocation8 + $0xe8] sm:$0xff]
    %v1695 = vld [vmem:[#allocation8 + $0xf0] sm:$0xff]
    %v1696 = vld [vmem:[#allocation8 + $0xf8] sm:$0xff]
    %v1697 = vld [vmem:[#allocation8 + $0x100] sm:$0xff]
    %v1698 = vld [vmem:[#allocation8 + $0x108] sm:$0xff]
    %v1699 = vld [vmem:[#allocation8 + $0x110] sm:$0xff]
    %v1700 = vld [vmem:[#allocation8 + $0x118] sm:$0xff]
    %v1701 = vld [vmem:[#allocation8 + $0x120] sm:$0xff]
    %v1702 = vld [vmem:[#allocation8 + $0x128] sm:$0xff]
    %v1703 = vld [vmem:[#allocation8 + $0x130] sm:$0xff]
    %v1704 = vld [vmem:[#allocation8 + $0x138] sm:$0xff]
    %v1705 = vld [vmem:[#allocation8 + $0x140] sm:$0xff]
    %v1706 = vld [vmem:[#allocation8 + $0x148] sm:$0xff]
    %v1707 = vld [vmem:[#allocation8 + $0x150] sm:$0xff]
    %v1708 = vld [vmem:[#allocation8 + $0x158] sm:$0xff]
    %v1709 = vld [vmem:[#allocation8 + $0x160] sm:$0xff]
    %v1710 = vld [vmem:[#allocation8 + $0x168] sm:$0xff]
    %v1711 = vld [vmem:[#allocation8 + $0x170] sm:$0xff]
    %v1712 = vld [vmem:[#allocation8 + $0x178] sm:$0xff]
    %v1713 = vld [vmem:[#allocation8 + $0x180] sm:$0xff]
    %v1714 = vld [vmem:[#allocation8 + $0x188] sm:$0xff]
    %v1715 = vld [vmem:[#allocation8 + $0x190] sm:$0xff]
    %v1716 = vld [vmem:[#allocation8 + $0x198] sm:$0xff]
    %v1717 = vld [vmem:[#allocation8 + $0x1a0] sm:$0xff]
    %v1718 = vld [vmem:[#allocation8 + $0x1a8] sm:$0xff]
    %v1719 = vld [vmem:[#allocation8 + $0x1b0] sm:$0xff]
    %v1720 = vld [vmem:[#allocation8 + $0x1b8] sm:$0xff]
    %v1721 = vld [vmem:[#allocation8 + $0x1c0] sm:$0xff]
    %v1722 = vld [vmem:[#allocation8 + $0x1c8] sm:$0xff]
    %v1723 = vld [vmem:[#allocation8 + $0x1d0] sm:$0xff]
    %v1724 = vld [vmem:[#allocation8 + $0x1d8] sm:$0xff]
    %v1725 = vld [vmem:[#allocation8 + $0x1e0] sm:$0xff]
    %v1726 = vld [vmem:[#allocation8 + $0x1e8] sm:$0xff]
    %v1727 = vld [vmem:[#allocation8 + $0x1f0] sm:$0xff]
    %v1728 = vld [vmem:[#allocation8 + $0x1f8] sm:$0xff]
    %v1729 = vld [vmem:[%s4] sm:$0x3]
    %v1731 = vlaneseq
    %v1732 = vshrl.u32 %v1731, 7
    %v1733 = vsub.s32 0, %v1732
    %v1734 = vrot.slane %v1729, %v1733
    %v1735 = vlaneseq
    %v1736 = vshrl.u32 %v1735, 7
    %v1737 = vsub.s32 1, %v1736
    %v1738 = vrot.slane %v1729, %v1737
    %v1805 = vunpack.c.l.b16 %v1665
    %v1806 = vunpack.c.h.b16 %v1665
    %v1807 = vunpack.c.l.b16 %v1666
    %v1808 = vunpack.c.h.b16 %v1666
    %v1809 = vunpack.c.l.b16 %v1667
    %v1810 = vunpack.c.h.b16 %v1667
    %v1811 = vunpack.c.l.b16 %v1668
    %v1812 = vunpack.c.h.b16 %v1668
    %v1813 = vunpack.c.l.b16 %v1669
    %v1814 = vunpack.c.h.b16 %v1669
    %v1815 = vunpack.c.l.b16 %v1670
    %v1816 = vunpack.c.h.b16 %v1670
    %v1817 = vunpack.c.l.b16 %v1671
    %v1818 = vunpack.c.h.b16 %v1671
    %v1819 = vunpack.c.l.b16 %v1672
    %v1820 = vunpack.c.h.b16 %v1672
    %v1821 = vunpack.c.l.b16 %v1673
    %v1822 = vunpack.c.h.b16 %v1673
    %v1823 = vunpack.c.l.b16 %v1674
    %v1824 = vunpack.c.h.b16 %v1674
    %v1825 = vunpack.c.l.b16 %v1675
    %v1826 = vunpack.c.h.b16 %v1675
    %v1827 = vunpack.c.l.b16 %v1676
    %v1828 = vunpack.c.h.b16 %v1676
    %v1829 = vunpack.c.l.b16 %v1677
    %v1830 = vunpack.c.h.b16 %v1677
    %v1831 = vunpack.c.l.b16 %v1678
    %v1832 = vunpack.c.h.b16 %v1678
    %v1833 = vunpack.c.l.b16 %v1679
    %v1834 = vunpack.c.h.b16 %v1679
    %v1835 = vunpack.c.l.b16 %v1680
    %v1836 = vunpack.c.h.b16 %v1680
    %v1837 = vunpack.c.l.b16 %v1681
    %v1838 = vunpack.c.h.b16 %v1681
    %v1839 = vunpack.c.l.b16 %v1682
    %v1840 = vunpack.c.h.b16 %v1682
    %v1841 = vunpack.c.l.b16 %v1683
    %v1842 = vunpack.c.h.b16 %v1683
    %v1843 = vunpack.c.l.b16 %v1684
    %v1844 = vunpack.c.h.b16 %v1684
    %v1845 = vunpack.c.l.b16 %v1685
    %v1846 = vunpack.c.h.b16 %v1685
    %v1847 = vunpack.c.l.b16 %v1686
    %v1848 = vunpack.c.h.b16 %v1686
    %v1849 = vunpack.c.l.b16 %v1687
    %v1850 = vunpack.c.h.b16 %v1687
    %v1851 = vunpack.c.l.b16 %v1688
    %v1852 = vunpack.c.h.b16 %v1688
    %v1853 = vunpack.c.l.b16 %v1689
    %v1854 = vunpack.c.h.b16 %v1689
    %v1855 = vunpack.c.l.b16 %v1690
    %v1856 = vunpack.c.h.b16 %v1690
    %v1857 = vunpack.c.l.b16 %v1691
    %v1858 = vunpack.c.h.b16 %v1691
    %v1859 = vunpack.c.l.b16 %v1692
    %v1860 = vunpack.c.h.b16 %v1692
    %v1861 = vunpack.c.l.b16 %v1693
    %v1862 = vunpack.c.h.b16 %v1693
    %v1863 = vunpack.c.l.b16 %v1694
    %v1864 = vunpack.c.h.b16 %v1694
    %v1865 = vunpack.c.l.b16 %v1695
    %v1866 = vunpack.c.h.b16 %v1695
    %v1867 = vunpack.c.l.b16 %v1696
    %v1868 = vunpack.c.h.b16 %v1696
    %v1869 = vunpack.c.l.b16 %v1697
    %v1870 = vunpack.c.h.b16 %v1697
    %v1871 = vunpack.c.l.b16 %v1698
    %v1872 = vunpack.c.h.b16 %v1698
    %v1873 = vunpack.c.l.b16 %v1699
    %v1874 = vunpack.c.h.b16 %v1699
    %v1875 = vunpack.c.l.b16 %v1700
    %v1876 = vunpack.c.h.b16 %v1700
    %v1877 = vunpack.c.l.b16 %v1701
    %v1878 = vunpack.c.h.b16 %v1701
    %v1879 = vunpack.c.l.b16 %v1702
    %v1880 = vunpack.c.h.b16 %v1702
    %v1881 = vunpack.c.l.b16 %v1703
    %v1882 = vunpack.c.h.b16 %v1703
    %v1883 = vunpack.c.l.b16 %v1704
    %v1884 = vunpack.c.h.b16 %v1704
    %v1885 = vunpack.c.l.b16 %v1705
    %v1886 = vunpack.c.h.b16 %v1705
    %v1887 = vunpack.c.l.b16 %v1706
    %v1888 = vunpack.c.h.b16 %v1706
    %v1889 = vunpack.c.l.b16 %v1707
    %v1890 = vunpack.c.h.b16 %v1707
    %v1891 = vunpack.c.l.b16 %v1708
    %v1892 = vunpack.c.h.b16 %v1708
    %v1893 = vunpack.c.l.b16 %v1709
    %v1894 = vunpack.c.h.b16 %v1709
    %v1895 = vunpack.c.l.b16 %v1710
    %v1896 = vunpack.c.h.b16 %v1710
    %v1897 = vunpack.c.l.b16 %v1711
    %v1898 = vunpack.c.h.b16 %v1711
    %v1899 = vunpack.c.l.b16 %v1712
    %v1900 = vunpack.c.h.b16 %v1712
    %v1901 = vunpack.c.l.b16 %v1713
    %v1902 = vunpack.c.h.b16 %v1713
    %v1903 = vunpack.c.l.b16 %v1714
    %v1904 = vunpack.c.h.b16 %v1714
    %v1905 = vunpack.c.l.b16 %v1715
    %v1906 = vunpack.c.h.b16 %v1715
    %v1907 = vunpack.c.l.b16 %v1716
    %v1908 = vunpack.c.h.b16 %v1716
    %v1909 = vunpack.c.l.b16 %v1717
    %v1910 = vunpack.c.h.b16 %v1717
    %v1911 = vunpack.c.l.b16 %v1718
    %v1912 = vunpack.c.h.b16 %v1718
    %v1913 = vunpack.c.l.b16 %v1719
    %v1914 = vunpack.c.h.b16 %v1719
    %v1915 = vunpack.c.l.b16 %v1720
    %v1916 = vunpack.c.h.b16 %v1720
    %v1917 = vunpack.c.l.b16 %v1721
    %v1918 = vunpack.c.h.b16 %v1721
    %v1919 = vunpack.c.l.b16 %v1722
    %v1920 = vunpack.c.h.b16 %v1722
    %v1921 = vunpack.c.l.b16 %v1723
    %v1922 = vunpack.c.h.b16 %v1723
    %v1923 = vunpack.c.l.b16 %v1724
    %v1924 = vunpack.c.h.b16 %v1724
    %v1925 = vunpack.c.l.b16 %v1725
    %v1926 = vunpack.c.h.b16 %v1725
    %v1927 = vunpack.c.l.b16 %v1726
    %v1928 = vunpack.c.h.b16 %v1726
    %v1929 = vunpack.c.l.b16 %v1727
    %v1930 = vunpack.c.h.b16 %v1727
    %v1931 = vunpack.c.l.b16 %v1728
    %v1932 = vunpack.c.h.b16 %v1728
    %v1933 = vpack.c.b16 %v1807, %v1805
    %v1934 = vpack.c.b16 %v1808, %v1806
    %v1935 = vpack.c.b16 %v1811, %v1809
    %v1936 = vpack.c.b16 %v1812, %v1810
    %v1937 = vpack.c.b16 %v1815, %v1813
    %v1938 = vpack.c.b16 %v1816, %v1814
    %v1939 = vpack.c.b16 %v1819, %v1817
    %v1940 = vpack.c.b16 %v1820, %v1818
    %v1941 = vpack.c.b16 %v1823, %v1821
    %v1942 = vpack.c.b16 %v1824, %v1822
    %v1943 = vpack.c.b16 %v1827, %v1825
    %v1944 = vpack.c.b16 %v1828, %v1826
    %v1945 = vpack.c.b16 %v1831, %v1829
    %v1946 = vpack.c.b16 %v1832, %v1830
    %v1947 = vpack.c.b16 %v1835, %v1833
    %v1948 = vpack.c.b16 %v1836, %v1834
    %v1949 = vpack.c.b16 %v1839, %v1837
    %v1950 = vpack.c.b16 %v1840, %v1838
    %v1951 = vpack.c.b16 %v1843, %v1841
    %v1952 = vpack.c.b16 %v1844, %v1842
    %v1953 = vpack.c.b16 %v1847, %v1845
    %v1954 = vpack.c.b16 %v1848, %v1846
    %v1955 = vpack.c.b16 %v1851, %v1849
    %v1956 = vpack.c.b16 %v1852, %v1850
    %v1957 = vpack.c.b16 %v1855, %v1853
    %v1958 = vpack.c.b16 %v1856, %v1854
    %v1959 = vpack.c.b16 %v1859, %v1857
    %v1960 = vpack.c.b16 %v1860, %v1858
    %v1961 = vpack.c.b16 %v1863, %v1861
    %v1962 = vpack.c.b16 %v1864, %v1862
    %v1963 = vpack.c.b16 %v1867, %v1865
    %v1964 = vpack.c.b16 %v1868, %v1866
    %v1965 = vpack.c.b16 %v1871, %v1869
    %v1966 = vpack.c.b16 %v1872, %v1870
    %v1967 = vpack.c.b16 %v1875, %v1873
    %v1968 = vpack.c.b16 %v1876, %v1874
    %v1969 = vpack.c.b16 %v1879, %v1877
    %v1970 = vpack.c.b16 %v1880, %v1878
    %v1971 = vpack.c.b16 %v1883, %v1881
    %v1972 = vpack.c.b16 %v1884, %v1882
    %v1973 = vpack.c.b16 %v1887, %v1885
    %v1974 = vpack.c.b16 %v1888, %v1886
    %v1975 = vpack.c.b16 %v1891, %v1889
    %v1976 = vpack.c.b16 %v1892, %v1890
    %v1977 = vpack.c.b16 %v1895, %v1893
    %v1978 = vpack.c.b16 %v1896, %v1894
    %v1979 = vpack.c.b16 %v1899, %v1897
    %v1980 = vpack.c.b16 %v1900, %v1898
    %v1981 = vpack.c.b16 %v1903, %v1901
    %v1982 = vpack.c.b16 %v1904, %v1902
    %v1983 = vpack.c.b16 %v1907, %v1905
    %v1984 = vpack.c.b16 %v1908, %v1906
    %v1985 = vpack.c.b16 %v1911, %v1909
    %v1986 = vpack.c.b16 %v1912, %v1910
    %v1987 = vpack.c.b16 %v1915, %v1913
    %v1988 = vpack.c.b16 %v1916, %v1914
    %v1989 = vpack.c.b16 %v1919, %v1917
    %v1990 = vpack.c.b16 %v1920, %v1918
    %v1991 = vpack.c.b16 %v1923, %v1921
    %v1992 = vpack.c.b16 %v1924, %v1922
    %v1993 = vpack.c.b16 %v1927, %v1925
    %v1994 = vpack.c.b16 %v1928, %v1926
    %v1995 = vpack.c.b16 %v1931, %v1929
    %v1996 = vpack.c.b16 %v1932, %v1930
    %2061 = vmatprep.subr.bf16.mxu0 %v1948
    %2062 = vmatpush1.bf16.msra.mxu0 %v1947
    %2063 = vmatprep.subr.bf16.mxu0 %v1946
    %2064 = vmatpush1.bf16.msra.mxu0 %v1945
    %2065 = vmatprep.subr.bf16.mxu0 %v1944
    %2066 = vmatpush1.bf16.msra.mxu0 %v1943
    %2067 = vmatprep.subr.bf16.mxu0 %v1942
    %2068 = vmatpush1.bf16.msra.mxu0 %v1941
    %2069 = vmatprep.subr.bf16.mxu0 %v1940
    %2070 = vmatpush1.bf16.msra.mxu0 %v1939
    %2071 = vmatprep.subr.bf16.mxu0 %v1938
    %2072 = vmatpush1.bf16.msra.mxu0 %v1937
    %2073 = vmatprep.subr.bf16.mxu0 %v1936
    %2074 = vmatpush1.bf16.msra.mxu0 %v1935
    %2075 = vmatprep.subr.bf16.mxu0 %v1934
    %2076 = vmatpush1.bf16.msra.mxu0 %v1933
    %2077 = vmatprep.subr.bf16.mxu0 %v1964
    %2078 = vmatpush2.bf16.msra.mxu0 %v1963
    %2079 = vmatprep.subr.bf16.mxu0 %v1962
    %2080 = vmatpush2.bf16.msra.mxu0 %v1961
    %2081 = vmatprep.subr.bf16.mxu0 %v1960
    %2082 = vmatpush2.bf16.msra.mxu0 %v1959
    %2083 = vmatprep.subr.bf16.mxu0 %v1958
    %2084 = vmatpush2.bf16.msra.mxu0 %v1957
    %2085 = vmatprep.subr.bf16.mxu0 %v1956
    %2086 = vmatpush2.bf16.msra.mxu0 %v1955
    %2087 = vmatprep.subr.bf16.mxu0 %v1954
    %2088 = vmatpush2.bf16.msra.mxu0 %v1953
    %2089 = vmatprep.subr.bf16.mxu0 %v1952
    %2090 = vmatpush2.bf16.msra.mxu0 %v1951
    %2091 = vmatprep.subr.bf16.mxu0 %v1950
    %2092 = vmatpush2.bf16.msra.mxu0 %v1949
    %2093 = vmatprep.mubr.bf16.mxu0 %v1662
    %2094 = vmatmul.mubr.bf16.gmra.mxu0 %v1661
    %v2095 = vpop.f32.mrf.mxu0
    %v2096 = vadd.f32 %v1734, %v2095
    %v2097 = vpop.f32.mrf.mxu0
    %v2098 = vadd.f32 %v1738, %v2097
    %v2099 = vpop.f32.mrf.mxu0
    %v2100 = vpop.f32.mrf.mxu0
    %2101 = vdwg.mxu0
    %2102 = vmatprep.subr.bf16.mxu0 %v1980
    %2103 = vmatpush1.bf16.msra.mxu0 %v1979
    %2104 = vmatprep.subr.bf16.mxu0 %v1978
    %2105 = vmatpush1.bf16.msra.mxu0 %v1977
    %2106 = vmatprep.subr.bf16.mxu0 %v1976
    %2107 = vmatpush1.bf16.msra.mxu0 %v1975
    %2108 = vmatprep.subr.bf16.mxu0 %v1974
    %2109 = vmatpush1.bf16.msra.mxu0 %v1973
    %2110 = vmatprep.subr.bf16.mxu0 %v1972
    %2111 = vmatpush1.bf16.msra.mxu0 %v1971
    %2112 = vmatprep.subr.bf16.mxu0 %v1970
    %2113 = vmatpush1.bf16.msra.mxu0 %v1969
    %2114 = vmatprep.subr.bf16.mxu0 %v1968
    %2115 = vmatpush1.bf16.msra.mxu0 %v1967
    %2116 = vmatprep.subr.bf16.mxu0 %v1966
    %2117 = vmatpush1.bf16.msra.mxu0 %v1965
    %2118 = vmatprep.subr.bf16.mxu0 %v1996
    %2119 = vmatpush2.bf16.msra.mxu0 %v1995
    %2120 = vmatprep.subr.bf16.mxu0 %v1994
    %2121 = vmatpush2.bf16.msra.mxu0 %v1993
    %2122 = vmatprep.subr.bf16.mxu0 %v1992
    %2123 = vmatpush2.bf16.msra.mxu0 %v1991
    %2124 = vmatprep.subr.bf16.mxu0 %v1990
    %2125 = vmatpush2.bf16.msra.mxu0 %v1989
    %2126 = vmatprep.subr.bf16.mxu0 %v1988
    %2127 = vmatpush2.bf16.msra.mxu0 %v1987
    %2128 = vmatprep.subr.bf16.mxu0 %v1986
    %2129 = vmatpush2.bf16.msra.mxu0 %v1985
    %2130 = vmatprep.subr.bf16.mxu0 %v1984
    %2131 = vmatpush2.bf16.msra.mxu0 %v1983
    %2132 = vmatprep.subr.bf16.mxu0 %v1982
    %2133 = vmatpush2.bf16.msra.mxu0 %v1981
    %2134 = vmatprep.mubr.bf16.mxu0 %v1664
    %2135 = vmatmul.mubr.bf16.gmra.mxu0 %v1663
    %v2136 = vpop.f32.mrf.mxu0
    %v2137 = vadd.f32 %v2096, %v2136
    %v2138 = vpop.f32.mrf.mxu0
    %v2139 = vadd.f32 %v2098, %v2138
    %v2140 = vpop.f32.mrf.mxu0
    %v2141 = vpop.f32.mrf.mxu0
    %2142 = vdwg.mxu0
    %vm2143 = vcmp.ge.f32.partialorder %v2137, 0.0
    %vm2144 = vcmp.ge.f32.partialorder %v2139, 0.0
    %v2145 = vmul.f32 %v2137, 0.2
    %v2146 = vmul.f32 %v2139, 0.2
    %v2147 = vsel %vm2143, %v2137, %v2145
    %v2148 = vsel %vm2144, %v2139, %v2146
    %v2149 = vld [vmem:[%s5] sm:$0x3]
    %v2151 = vlaneseq
    %v2152 = vshrl.u32 %v2151, 7
    %v2153 = vsub.s32 0, %v2152
    %v2154 = vrot.slane %v2149, %v2153
    %v2155 = vlaneseq
    %v2156 = vshrl.u32 %v2155, 7
    %v2157 = vsub.s32 1, %v2156
    %v2158 = vrot.slane %v2149, %v2157
    %v2161 = vmul.f32 %v2147, %v2154
    %v2162 = vmul.f32 %v2148, %v2158
    %vm2163 = vcmask 1041408
    %v2164 = vsel %vm2163, %v2161, 0.0
    %v2165 = vsel %vm2163, %v2162, 0.0
    %v2166 = vadd.f32 %v2164, %v2165
    %2167 = vadd.xlane.f32.xlu0 %v2166
    %v2168 = vpop.xlane.xlu0 %2167
    %s2169 = sld [smem:[#allocation2]]
    %v2170 = vstv %s2169
    %v2171 = vadd.f32 %v2168, %v2170
    %v2173 = vlaneseq
    %v2174 = vand.u32 %v2173, 127
    %v2175 = vlaneseq
    %v2176 = vshrl.u32 %v2175, 7
    %v2177 = vsub.s32 %v2174, %v2176
    %v2178 = vrot.slane %v2171, %v2177
    %vm2180 = vcmask 8192
    %2181 = vst.msk [vmem:[#allocation9] sm:$0x1] %vm2180, %v2178
    // Predicated region
    $region42: #{tpu_custom_call.1} parent=1 // pred_check
      _
    $region43: #{tpu_custom_call.1} parent=1 // pred_check_branch
      %2183 = sbr.rel (0) target = $region45
    $region44: #{tpu_custom_call.1} parent=1 // pred_region
      %s2185 = ssub.s32 16, 16
      %2186 = vsyncadd [#allocation5], %s2185
      %s2188 = sshll.u32 [#allocation9], 4
      %s2189 = int_to_ptr.vmem [resolvable:$true] %s2188
      %2191 = dma.vmem_to_hbm [thread:$0]  %s2189, 16, %s7, [#allocation5]
    $region45: #{tpu_custom_call.1} parent=1 // pred_fallthru
      _
    // Predicated region
    $region46: #{tpu_custom_call.1} parent=1 // pred_check
      _
    $region47: #{tpu_custom_call.1} parent=1 // pred_check_branch
      %2193 = sbr.rel (0) target = $region49
    $region48: #{tpu_custom_call.1} parent=1 // pred_region
      %2194 = dma.done [#allocation5], 16
    $region49: #{tpu_custom_call.1} parent=1 // pred_fallthru
      _
    %2195 = vsyncpa [#allocation4], 1
    %2196 = vsyncpa [#allocation7], 1
    %2197 = vsyncpa [#allocation5], 1

</llo_original>
